<compile_context>
chip_gen: v5e
topology: v5e:2x2
jax: 0.10.0
libtpu: 0.0.40
codegen_flags: <defaults>
</compile_context>

<pallas_src>
import functools

import jax
import jax.numpy as jnp
from jax.experimental import pallas as pl
from jax.experimental.pallas import tpu as pltpu


# ------------------------------ Pallas kernel -------------------------------

def _fused_mlp_chain_kernel(*refs, num_layers):
    """refs = (x_ref, w1,b1,a1, ..., wL,bL,aL, o_ref).

    Computes h = prelu(h @ W_i + b_i, a_i) for i = 1..L entirely in
    vregs/VMEM for one (TM, K) row tile; single store at the end.
    Weights are bf16; accumulation is f32 on the MXU.
    """
    x_ref = refs[0]
    o_ref = refs[-1]
    h = x_ref[...]                                         # [TM, K] f32
    for i in range(num_layers):                            # unrolled at trace time
        w_ref = refs[1 + 3 * i]
        b_ref = refs[2 + 3 * i]
        a_ref = refs[3 + 3 * i]
        y = jnp.dot(h.astype(w_ref.dtype), w_ref[...],
                    preferred_element_type=jnp.float32)
        y = y + b_ref[...]
        # PReLU: where(y >= 0, y, alpha * y)
        h = jnp.where(y >= 0.0, y, a_ref[...] * y)
    o_ref[...] = h.astype(o_ref.dtype)


def _pick_row_tile(n):
    """Largest row tile <= 512 that divides n (multiple of 8), else n."""
    for tm in (512, 256, 128, 64, 32, 16, 8):
        if n % tm == 0:
            return tm
    return n  # block == full array bypasses the (8,128) divisibility rule


def fused_mlp_chain(x, layer_ops, *, block_rows=None):
    """Run an entire Linear+PReLU chain in ONE pallas_call with a row grid.

    x:          [N, K] f32 at its natural width (no padding).
    layer_ops:  list of (W[d_in, d_out] bf16, b[1, d_out] f32, a[1, d_out] f32).
    """
    n, k = x.shape
    assert layer_ops[0][0].shape[0] == k, (layer_ops[0][0].shape, k)
    num_layers = len(layer_ops)
    out_dim = int(layer_ops[-1][0].shape[1])
    flat = [t for op in layer_ops for t in op]

    tm = _pick_row_tile(n) if block_rows is None else block_rows
    grid = (pl.cdiv(n, tm),)

    in_specs = [pl.BlockSpec((tm, k), lambda i: (i, 0))]
    for w, b, a in layer_ops:
        # Constant block index -> Pallas keeps weights/bias/alpha VMEM-resident
        # across the whole row grid (no per-step re-DMA).
        in_specs += [
            pl.BlockSpec(w.shape, lambda i: (0, 0)),
            pl.BlockSpec(b.shape, lambda i: (0, 0)),
            pl.BlockSpec(a.shape, lambda i: (0, 0)),
        ]
    out_specs = pl.BlockSpec((tm, out_dim), lambda i: (i, 0))

    flops = 2 * n * sum(int(w.shape[0]) * int(w.shape[1]) for w, _, _ in layer_ops)
    bytes_accessed = (int(x.size) * x.dtype.itemsize
                      + n * out_dim * 4
                      + sum(int(t.size) * t.dtype.itemsize for t in flat))

    return pl.pallas_call(
        functools.partial(_fused_mlp_chain_kernel, num_layers=num_layers),
        out_shape=jax.ShapeDtypeStruct((n, out_dim), jnp.float32),
        grid=grid,
        in_specs=in_specs,
        out_specs=out_specs,
        compiler_params=pltpu.CompilerParams(
            dimension_semantics=("parallel",)),
        cost_estimate=pl.CostEstimate(
            flops=flops, transcendentals=0, bytes_accessed=bytes_accessed),
    )(x, *flat)


# --------------------------- parameter construction -------------------------

def init_mlp_params(key, in_dim, units_list):
    """MLP = [MyLinear + MyPReLU + Dropout] * len(units_list) (activation=None).

    MyLinear: xavier_normal_ weights (torch layout [out, in]), zero bias.
    MyPReLU: single shared alpha = 0.25.
    """
    dims = [in_dim] + list(units_list)
    params = []
    for i in range(len(dims) - 1):
        key, sub = jax.random.split(key)
        fan_in, fan_out = dims[i], dims[i + 1]
        std = (2.0 / (fan_in + fan_out)) ** 0.5
        w_pt = std * jax.random.normal(sub, (fan_out, fan_in), jnp.float32)
        b = jnp.zeros((fan_out,), jnp.float32)
        alpha = jnp.float32(0.25)
        params.append((w_pt, b, alpha))
    return key, params


def build_mlp_ops(params, weight_dtype=jnp.bfloat16):
    """Plain MLP: per-layer (W[d_in,d_out] bf16, b[1,d_out], a[1,d_out]), natural dims."""
    ops = []
    for w_pt, b, alpha in params:
        dout, _ = w_pt.shape
        W = w_pt.T.astype(weight_dtype)
        B = b.reshape(1, dout).astype(jnp.float32)
        A = jnp.full((1, dout), alpha, jnp.float32)
        ops.append((W, B, A))
    return ops


def build_multi_group_ops(group_params_list, global_params, input_dims,
                          weight_dtype=jnp.bfloat16):
    """Pack the multi-group forward (G group MLPs + mean + global MLP) into a
    single 4-layer chain at natural (unpadded) widths:

      layer 1/2: block-diagonal packing of the G group MLP layers,
      layer 3:   first global layer with the 1/G group-mean folded into a
                 G-fold replicated weight (mean -> Linear == concat -> Linear/G),
      layer 4:   last global layer.
    """
    G = len(group_params_list)

    # layer 1: block-diagonal over [sum(input_dims)] x [sum(layer-1 outs)]
    outs1 = [p[0][0].shape[0] for p in group_params_list]
    din_tot, dout1_tot = sum(input_dims), sum(outs1)
    W1 = jnp.zeros((din_tot, dout1_tot), jnp.float32)
    B1 = jnp.zeros((1, dout1_tot), jnp.float32)
    A1 = jnp.zeros((1, dout1_tot), jnp.float32)
    k_off = n_off = 0
    for p, din in zip(group_params_list, input_dims):
        w_pt, b, alpha = p[0]
        dout = w_pt.shape[0]
        W1 = W1.at[k_off:k_off + din, n_off:n_off + dout].set(w_pt.T)
        B1 = B1.at[0, n_off:n_off + dout].set(b)
        A1 = A1.at[0, n_off:n_off + dout].set(alpha)
        k_off += din
        n_off += dout

    # layer 2: block-diagonal
    outs2 = [p[1][0].shape[0] for p in group_params_list]
    dout2_tot = sum(outs2)
    W2 = jnp.zeros((dout1_tot, dout2_tot), jnp.float32)
    B2 = jnp.zeros((1, dout2_tot), jnp.float32)
    A2 = jnp.zeros((1, dout2_tot), jnp.float32)
    k_off = n_off = 0
    for p in group_params_list:
        w_pt, b, alpha = p[1]
        dout, din = w_pt.shape
        W2 = W2.at[k_off:k_off + din, n_off:n_off + dout].set(w_pt.T)
        B2 = B2.at[0, n_off:n_off + dout].set(b)
        A2 = A2.at[0, n_off:n_off + dout].set(alpha)
        k_off += din
        n_off += dout

    # layer 3: global layer-1 with folded mean:
    #   mean_g(h_g) @ W  ==  concat_g(h_g) @ vstack_g(W / G)
    (wg1, bg1, ag1), (wg2, bg2, ag2) = global_params
    e1, din_g = wg1.shape
    assert din_g * G == dout2_tot
    W3 = jnp.concatenate([wg1.T / G] * G, axis=0)          # [dout2_tot, e1]
    B3 = bg1.reshape(1, e1)
    A3 = jnp.full((1, e1), ag1, jnp.float32)

    # layer 4: global layer-2
    e2 = wg2.shape[0]
    W4 = wg2.T
    B4 = bg2.reshape(1, e2)
    A4 = jnp.full((1, e2), ag2, jnp.float32)

    ops = [(W1, B1, A1), (W2, B2, A2), (W3, B3, A3), (W4, B4, A4)]
    return [(w.astype(weight_dtype), b, a) for w, b, a in ops]


# ------------------------------ JAX references -------------------------------

def mlp_ref_f32(x, params):
    """Original torch-semantics forward in full f32 (loose sanity check)."""
    h = x
    for w_pt, b, alpha in params:
        y = jnp.dot(h, w_pt.T, precision=jax.lax.Precision.HIGHEST) + b
        h = jnp.where(y >= 0.0, y, alpha * y)
    return h


def mgf_ref_f32(x_list, group_params_list, global_params):
    hs = [mlp_ref_f32(x, p) for x, p in zip(x_list, group_params_list)]
    merged = jnp.mean(jnp.stack(hs, axis=0), axis=0)
    return mlp_ref_f32(merged, global_params)


def chain_ref(x, layer_ops):
    """Matched-precision reference: identical packed bf16/f32 math in plain JAX."""
    h = x
    for w, b, a in layer_ops:
        y = jnp.dot(h.astype(w.dtype), w, preferred_element_type=jnp.float32) + b
        h = jnp.where(y >= 0.0, y, a * y)
    return h


# ----------------------------------- main -----------------------------------

if __name__ == "__main__":
    key = jax.random.PRNGKey(0)

    N = 1024                               # batch many rows per MXU weight push
    input_dims = [16, 24, 32]              # per-group feature dims -> 3 groups
    group_units = [32, 16]                 # each group MLP
    global_units = [32, 8]                 # global MLP (mean-merge input = 16)

    # per-group MLP params + global MLP params (torch layout / init)
    group_params_list = []
    for d in input_dims:
        key, p = init_mlp_params(key, d, group_units)
        group_params_list.append(p)
    key, global_params = init_mlp_params(key, group_units[-1], global_units)

    # deterministic inputs
    x_list = []
    for d in input_dims:
        key, sub = jax.random.split(key)
        x_list.append(jax.random.normal(sub, (N, d), jnp.float32))

    fwd = jax.jit(fused_mlp_chain, static_argnames=("block_rows",))

    # (a) the spec `MLP` module itself: whole Linear+PReLU chain in ONE kernel
    mlp_ops = build_mlp_ops(group_params_list[0])
    y_mlp = jax.block_until_ready(fwd(x_list[0], mlp_ops))
    assert y_mlp.shape == (N, group_units[-1]), y_mlp.shape
    assert y_mlp.dtype == jnp.float32
    y_mlp_match = chain_ref(x_list[0], mlp_ops)                 # matched precision
    assert jnp.allclose(y_mlp, y_mlp_match, rtol=2e-3, atol=2e-3), \
        float(jnp.max(jnp.abs(y_mlp - y_mlp_match)))
    y_mlp_f32 = mlp_ref_f32(x_list[0], group_params_list[0])    # loose f32 sanity
    assert jnp.allclose(y_mlp, y_mlp_f32, rtol=5e-2, atol=5e-2), \
        float(jnp.max(jnp.abs(y_mlp - y_mlp_f32)))

    # (b) full multi-group forward (3 group MLPs + mean merge + global MLP):
    #     all 9 original matmuls + the mean collapsed into ONE pallas_call of
    #     4 row-tiled matmuls with VMEM-resident bf16 weights.
    x_cat = jnp.concatenate(x_list, axis=-1)                     # [N, 72]
    mgf_ops = build_multi_group_ops(group_params_list, global_params, input_dims)
    y_mgf = jax.block_until_ready(fwd(x_cat, mgf_ops))
    assert y_mgf.shape == (N, global_units[-1]), y_mgf.shape
    assert y_mgf.dtype == jnp.float32
    y_mgf_match = chain_ref(x_cat, mgf_ops)                      # matched precision
    assert jnp.allclose(y_mgf, y_mgf_match, rtol=2e-3, atol=2e-3), \
        float(jnp.max(jnp.abs(y_mgf - y_mgf_match)))
    y_mgf_f32 = mgf_ref_f32(x_list, group_params_list, global_params)
    assert jnp.allclose(y_mgf, y_mgf_f32, rtol=5e-2, atol=5e-2), \
        float(jnp.max(jnp.abs(y_mgf - y_mgf_f32)))

    print("KERNEL_OK")
</pallas_src>

<mosaic_0001>
module attributes {stable_mosaic.version = 11 : i64} {
  func.func @_fused_mlp_chain_kernel(%arg0: i32, %arg1: memref<512x16xf32, #tpu.memory_space<vmem>>, %arg2: memref<16x32xbf16, #tpu.memory_space<vmem>>, %arg3: memref<1x32xf32, #tpu.memory_space<vmem>>, %arg4: memref<1x32xf32, #tpu.memory_space<vmem>>, %arg5: memref<32x16xbf16, #tpu.memory_space<vmem>>, %arg6: memref<1x16xf32, #tpu.memory_space<vmem>>, %arg7: memref<1x16xf32, #tpu.memory_space<vmem>>, %arg8: memref<512x16xf32, #tpu.memory_space<vmem>>) attributes {dimension_semantics = [#tpu.dimension_semantics<parallel>], iteration_bounds = array<i64: 2>, scalar_prefetch = 0 : i64, scratch_operands = 0 : i64, tpu.core_type = #tpu.core_type<tc>, window_params = [{transform_indices = @transform_0, window_bounds = array<i64: 512, 16>}, {pipeline_mode = #tpu.pipeline_mode<synchronous>, transform_indices = @transform_1, window_bounds = array<i64: 16, 32>}, {pipeline_mode = #tpu.pipeline_mode<synchronous>, transform_indices = @transform_2, window_bounds = array<i64: 1, 32>}, {pipeline_mode = #tpu.pipeline_mode<synchronous>, transform_indices = @transform_3, window_bounds = array<i64: 1, 32>}, {pipeline_mode = #tpu.pipeline_mode<synchronous>, transform_indices = @transform_4, window_bounds = array<i64: 32, 16>}, {pipeline_mode = #tpu.pipeline_mode<synchronous>, transform_indices = @transform_5, window_bounds = array<i64: 1, 16>}, {pipeline_mode = #tpu.pipeline_mode<synchronous>, transform_indices = @transform_6, window_bounds = array<i64: 1, 16>}, {transform_indices = @transform_7, window_bounds = array<i64: 512, 16>}]} {
    %c0 = arith.constant 0 : index
    %c0_0 = arith.constant 0 : index
    %0 = vector.load %arg1[%c0, %c0_0] : memref<512x16xf32, #tpu.memory_space<vmem>>, vector<512x16xf32>
    %1 = arith.truncf %0 : vector<512x16xf32> to vector<512x16xbf16>
    %c0_1 = arith.constant 0 : index
    %c0_2 = arith.constant 0 : index
    %2 = vector.load %arg2[%c0_1, %c0_2] : memref<16x32xbf16, #tpu.memory_space<vmem>>, vector<16x32xbf16>
    %cst = arith.constant dense<0.000000e+00> : vector<512x32xf32>
    %3 = tpu.matmul %1, %2, %cst {dimension_numbers = #tpu.dot_dimension_numbers<[1], [0], [0], [1], [0, 0, 1, 1], [], []>} : vector<512x16xbf16>, vector<16x32xbf16>, vector<512x32xf32> -> vector<512x32xf32>
    %c0_3 = arith.constant 0 : index
    %c0_4 = arith.constant 0 : index
    %4 = vector.load %arg3[%c0_3, %c0_4] : memref<1x32xf32, #tpu.memory_space<vmem>>, vector<1x32xf32>
    %5 = vector.broadcast %4 : vector<1x32xf32> to vector<512x32xf32>
    %6 = arith.addf %3, %5 : vector<512x32xf32>
    %cst_5 = arith.constant 0.000000e+00 : f32
    %7 = vector.broadcast %cst_5 : f32 to vector<512x32xf32>
    %8 = arith.cmpf oge, %6, %7 : vector<512x32xf32>
    %c0_6 = arith.constant 0 : index
    %c0_7 = arith.constant 0 : index
    %9 = vector.load %arg4[%c0_6, %c0_7] : memref<1x32xf32, #tpu.memory_space<vmem>>, vector<1x32xf32>
    %10 = vector.broadcast %9 : vector<1x32xf32> to vector<512x32xf32>
    %11 = arith.mulf %10, %6 : vector<512x32xf32>
    %12 = arith.select %8, %6, %11 : vector<512x32xi1>, vector<512x32xf32>
    %13 = arith.truncf %12 : vector<512x32xf32> to vector<512x32xbf16>
    %c0_8 = arith.constant 0 : index
    %c0_9 = arith.constant 0 : index
    %14 = vector.load %arg5[%c0_8, %c0_9] : memref<32x16xbf16, #tpu.memory_space<vmem>>, vector<32x16xbf16>
    %cst_10 = arith.constant dense<0.000000e+00> : vector<512x16xf32>
    %15 = tpu.matmul %13, %14, %cst_10 {dimension_numbers = #tpu.dot_dimension_numbers<[1], [0], [0], [1], [0, 0, 1, 1], [], []>} : vector<512x32xbf16>, vector<32x16xbf16>, vector<512x16xf32> -> vector<512x16xf32>
    %c0_11 = arith.constant 0 : index
    %c0_12 = arith.constant 0 : index
    %16 = vector.load %arg6[%c0_11, %c0_12] : memref<1x16xf32, #tpu.memory_space<vmem>>, vector<1x16xf32>
    %17 = vector.broadcast %16 : vector<1x16xf32> to vector<512x16xf32>
    %18 = arith.addf %15, %17 : vector<512x16xf32>
    %cst_13 = arith.constant 0.000000e+00 : f32
    %19 = vector.broadcast %cst_13 : f32 to vector<512x16xf32>
    %20 = arith.cmpf oge, %18, %19 : vector<512x16xf32>
    %c0_14 = arith.constant 0 : index
    %c0_15 = arith.constant 0 : index
    %21 = vector.load %arg7[%c0_14, %c0_15] : memref<1x16xf32, #tpu.memory_space<vmem>>, vector<1x16xf32>
    %22 = vector.broadcast %21 : vector<1x16xf32> to vector<512x16xf32>
    %23 = arith.mulf %22, %18 : vector<512x16xf32>
    %24 = arith.select %20, %18, %23 : vector<512x16xi1>, vector<512x16xf32>
    %c0_16 = arith.constant 0 : index
    %c0_17 = arith.constant 0 : index
    %25 = vector.load %arg8[%c0_16, %c0_17] : memref<512x16xf32, #tpu.memory_space<vmem>>, vector<512x16xf32>
    tpu.vector_store %arg8[%c0_16, %c0_17], %24 {strides = array<i32>} : memref<512x16xf32, #tpu.memory_space<vmem>>, vector<512x16xf32>,
    return
  }
  func.func @transform_0(%arg0: i32) -> (i32, i32) {
    %c0_i32 = arith.constant 0 : i32
    %c0_i32_0 = arith.constant 0 : i32
    return %arg0, %c0_i32 : i32, i32
  }
  func.func @transform_1(%arg0: i32) -> (i32, i32) {
    %c0_i32 = arith.constant 0 : i32
    %c0_i32_0 = arith.constant 0 : i32
    %c0_i32_1 = arith.constant 0 : i32
    return %c0_i32, %c0_i32_0 : i32, i32
  }
  func.func @transform_2(%arg0: i32) -> (i32, i32) {
    %c0_i32 = arith.constant 0 : i32
    %c0_i32_0 = arith.constant 0 : i32
    %c0_i32_1 = arith.constant 0 : i32
    return %c0_i32, %c0_i32_0 : i32, i32
  }
  func.func @transform_3(%arg0: i32) -> (i32, i32) {
    %c0_i32 = arith.constant 0 : i32
    %c0_i32_0 = arith.constant 0 : i32
    %c0_i32_1 = arith.constant 0 : i32
    return %c0_i32, %c0_i32_0 : i32, i32
  }
  func.func @transform_4(%arg0: i32) -> (i32, i32) {
    %c0_i32 = arith.constant 0 : i32
    %c0_i32_0 = arith.constant 0 : i32
    %c0_i32_1 = arith.constant 0 : i32
    return %c0_i32, %c0_i32_0 : i32, i32
  }
  func.func @transform_5(%arg0: i32) -> (i32, i32) {
    %c0_i32 = arith.constant 0 : i32
    %c0_i32_0 = arith.constant 0 : i32
    %c0_i32_1 = arith.constant 0 : i32
    return %c0_i32, %c0_i32_0 : i32, i32
  }
  func.func @transform_6(%arg0: i32) -> (i32, i32) {
    %c0_i32 = arith.constant 0 : i32
    %c0_i32_0 = arith.constant 0 : i32
    %c0_i32_1 = arith.constant 0 : i32
    return %c0_i32, %c0_i32_0 : i32, i32
  }
  func.func @transform_7(%arg0: i32) -> (i32, i32) {
    %c0_i32 = arith.constant 0 : i32
    %c0_i32_0 = arith.constant 0 : i32
    return %arg0, %c0_i32 : i32, i32
  }
}

</mosaic_0001>

<llo_original>
// kernel: fused_mlp_chain.1
$region0: #{fused_mlp_chain.1}
  #allocation0 [shape = 'u32[]', space=smem, size = 0x4, offset = 0x4, fixed_abs, tag = 'smem constant byte address 0x4 - core index']
  #allocation1 [shape = 'u32[72,128]{1,0:T(1,128)}', space=vmem, size = 0x9000, scoped, tag = 'internal scratch']
  %s0 = inlined_call_operand.vmem [shape: f32[1024,16], index: 0, kind: input, shape index: {}]
  %s1 = inlined_call_operand.vmem [shape: bf16[16,32], index: 1, kind: input, shape index: {}]
  %s2 = inlined_call_operand.vmem [shape: f32[1,32], index: 2, kind: input, shape index: {}]
  %s3 = inlined_call_operand.vmem [shape: f32[1,32], index: 3, kind: input, shape index: {}]
  %s4 = inlined_call_operand.vmem [shape: bf16[32,16], index: 4, kind: input, shape index: {}]
  %s5 = inlined_call_operand.vmem [shape: f32[1,16], index: 5, kind: input, shape index: {}]
  %s6 = inlined_call_operand.vmem [shape: f32[1,16], index: 6, kind: input, shape index: {}]
  %s7 = inlined_call_operand.vmem [shape: f32[1024,16], index: 7, kind: output, shape index: {}]
  %s8 = sld [smem:[#allocation0]]
  $region61: #{fused_mlp_chain.1} parent=0
    _
  %s10 = ssub.s32 1, %s8
  %s11 = scalar_select 0, %s10, %s8
  loop: start=0, step=1, limit=4
  $region2: #{fused_mlp_chain.1} parent=0 // loop_pre_header
    _
  $region3: #{fused_mlp_chain.1} parent=0 // loop_header
    %s13 = sphi 0, %s17
    %p14 = scmp.ge.s32.totalorder %s13, 4
    %s23 = sphi 0, %s25
    %s26 = sphi 0, %s23
    %s27 = sphi 0, %s26
    %s43 = sphi 0, %s27
    %s47 = sphi 0, %s47
    %s49 = sphi 0, %s47
    %s50 = sphi 0, %s49
    %s64 = sphi 0, %s50
    %s68 = sphi 0, %s68
    %s70 = sphi 0, %s68
    %s71 = sphi 0, %s70
    %s85 = sphi 0, %s71
    %s89 = sphi 0, %s89
    %s91 = sphi 0, %s89
    %s92 = sphi 0, %s91
    %s106 = sphi 0, %s92
    %s110 = sphi 0, %s110
    %s112 = sphi 0, %s110
    %s113 = sphi 0, %s112
    %s127 = sphi 0, %s113
    %s131 = sphi 0, %s131
    %s133 = sphi 0, %s131
    %s134 = sphi 0, %s133
    %s148 = sphi 0, %s134
    %s152 = sphi 0, %s152
    %s154 = sphi 0, %s152
    %s155 = sphi 0, %s154
    %s169 = sphi 0, %s155
    %s175 = sphi 0, %s177
    %s178 = sphi 0, %s175
    %s179 = sphi 0, %s178
    %s195 = sphi 0, %s179
  $region4: #{fused_mlp_chain.1} parent=0 // loop_header_branch
    %16 = sbr.rel (%p14) target = $region8
  $region5: #{fused_mlp_chain.1} parent=0 // loop_body
    %s18 = ssub.s32 %s13, 1
    %s19 = ssub.s32 %s13, 2
    %s20 = sadd.s32 %s13, 1
    %s21 = ssub.s32 %s13, %s20
    %p22 = scmp.eq.s32.totalorder %s21, 0
    %s24 = sadd.s32 %s23, 1
    %s25 = scalar_select %p22, %s23, %s24
    %p28 = pneg %p22
    %p29 = scmp.eq.s32.totalorder %s13, 1
    %p30 = por %p28, %p29
    %p31 = scmp.ne.s32.totalorder %s23, %s26
    %p32 = scmp.eq.s32.totalorder %s13, 0
    %p33 = por %p31, %p32
    %p34 = scmp.ne.s32.totalorder %s23, %s26
    %p35 = scmp.eq.s32.totalorder %s18, 1
    %p36 = por %p34, %p35
    %p37 = scmp.ne.s32.totalorder %s26, %s27
    %p38 = scmp.eq.s32.totalorder %s18, 0
    %p39 = por %p37, %p38
    %p40 = scmp.ne.s32.totalorder %s26, %s27
    %p41 = scmp.eq.s32.totalorder %s19, 1
    %p42 = por %p40, %p41
    %p44 = scmp.ne.s32.totalorder %s27, %s43
    %p45 = scmp.eq.s32.totalorder %s19, 0
    %p46 = por %p44, %p45
    %s48 = sadd.s32 %s47, 1
    %p51 = scmp.eq.s32.totalorder %s13, 1
    %p52 = scmp.ne.s32.totalorder %s47, %s49
    %p53 = scmp.eq.s32.totalorder %s13, 0
    %p54 = por %p52, %p53
    %p55 = scmp.ne.s32.totalorder %s47, %s49
    %p56 = scmp.eq.s32.totalorder %s18, 1
    %p57 = por %p55, %p56
    %p58 = scmp.ne.s32.totalorder %s49, %s50
    %p59 = scmp.eq.s32.totalorder %s18, 0
    %p60 = por %p58, %p59
    %p61 = scmp.ne.s32.totalorder %s49, %s50
    %p62 = scmp.eq.s32.totalorder %s19, 1
    %p63 = por %p61, %p62
    %p65 = scmp.ne.s32.totalorder %s50, %s64
    %p66 = scmp.eq.s32.totalorder %s19, 0
    %p67 = por %p65, %p66
    %s69 = sadd.s32 %s68, 1
    %p72 = scmp.eq.s32.totalorder %s13, 1
    %p73 = scmp.ne.s32.totalorder %s68, %s70
    %p74 = scmp.eq.s32.totalorder %s13, 0
    %p75 = por %p73, %p74
    %p76 = scmp.ne.s32.totalorder %s68, %s70
    %p77 = scmp.eq.s32.totalorder %s18, 1
    %p78 = por %p76, %p77
    %p79 = scmp.ne.s32.totalorder %s70, %s71
    %p80 = scmp.eq.s32.totalorder %s18, 0
    %p81 = por %p79, %p80
    %p82 = scmp.ne.s32.totalorder %s70, %s71
    %p83 = scmp.eq.s32.totalorder %s19, 1
    %p84 = por %p82, %p83
    %p86 = scmp.ne.s32.totalorder %s71, %s85
    %p87 = scmp.eq.s32.totalorder %s19, 0
    %p88 = por %p86, %p87
    %s90 = sadd.s32 %s89, 1
    %p93 = scmp.eq.s32.totalorder %s13, 1
    %p94 = scmp.ne.s32.totalorder %s89, %s91
    %p95 = scmp.eq.s32.totalorder %s13, 0
    %p96 = por %p94, %p95
    %p97 = scmp.ne.s32.totalorder %s89, %s91
    %p98 = scmp.eq.s32.totalorder %s18, 1
    %p99 = por %p97, %p98
    %p100 = scmp.ne.s32.totalorder %s91, %s92
    %p101 = scmp.eq.s32.totalorder %s18, 0
    %p102 = por %p100, %p101
    %p103 = scmp.ne.s32.totalorder %s91, %s92
    %p104 = scmp.eq.s32.totalorder %s19, 1
    %p105 = por %p103, %p104
    %p107 = scmp.ne.s32.totalorder %s92, %s106
    %p108 = scmp.eq.s32.totalorder %s19, 0
    %p109 = por %p107, %p108
    %s111 = sadd.s32 %s110, 1
    %p114 = scmp.eq.s32.totalorder %s13, 1
    %p115 = scmp.ne.s32.totalorder %s110, %s112
    %p116 = scmp.eq.s32.totalorder %s13, 0
    %p117 = por %p115, %p116
    %p118 = scmp.ne.s32.totalorder %s110, %s112
    %p119 = scmp.eq.s32.totalorder %s18, 1
    %p120 = por %p118, %p119
    %p121 = scmp.ne.s32.totalorder %s112, %s113
    %p122 = scmp.eq.s32.totalorder %s18, 0
    %p123 = por %p121, %p122
    %p124 = scmp.ne.s32.totalorder %s112, %s113
    %p125 = scmp.eq.s32.totalorder %s19, 1
    %p126 = por %p124, %p125
    %p128 = scmp.ne.s32.totalorder %s113, %s127
    %p129 = scmp.eq.s32.totalorder %s19, 0
    %p130 = por %p128, %p129
    %s132 = sadd.s32 %s131, 1
    %p135 = scmp.eq.s32.totalorder %s13, 1
    %p136 = scmp.ne.s32.totalorder %s131, %s133
    %p137 = scmp.eq.s32.totalorder %s13, 0
    %p138 = por %p136, %p137
    %p139 = scmp.ne.s32.totalorder %s131, %s133
    %p140 = scmp.eq.s32.totalorder %s18, 1
    %p141 = por %p139, %p140
    %p142 = scmp.ne.s32.totalorder %s133, %s134
    %p143 = scmp.eq.s32.totalorder %s18, 0
    %p144 = por %p142, %p143
    %p145 = scmp.ne.s32.totalorder %s133, %s134
    %p146 = scmp.eq.s32.totalorder %s19, 1
    %p147 = por %p145, %p146
    %p149 = scmp.ne.s32.totalorder %s134, %s148
    %p150 = scmp.eq.s32.totalorder %s19, 0
    %p151 = por %p149, %p150
    %s153 = sadd.s32 %s152, 1
    %p156 = scmp.eq.s32.totalorder %s13, 1
    %p157 = scmp.ne.s32.totalorder %s152, %s154
    %p158 = scmp.eq.s32.totalorder %s13, 0
    %p159 = por %p157, %p158
    %p160 = scmp.ne.s32.totalorder %s152, %s154
    %p161 = scmp.eq.s32.totalorder %s18, 1
    %p162 = por %p160, %p161
    %p163 = scmp.ne.s32.totalorder %s154, %s155
    %p164 = scmp.eq.s32.totalorder %s18, 0
    %p165 = por %p163, %p164
    %p166 = scmp.ne.s32.totalorder %s154, %s155
    %p167 = scmp.eq.s32.totalorder %s19, 1
    %p168 = por %p166, %p167
    %p170 = scmp.ne.s32.totalorder %s155, %s169
    %p171 = scmp.eq.s32.totalorder %s19, 0
    %p172 = por %p170, %p171
    %s173 = ssub.s32 %s13, %s20
    %p174 = scmp.eq.s32.totalorder %s173, 0
    %s176 = sadd.s32 %s175, 1
    %s177 = scalar_select %p174, %s175, %s176
    %p180 = pneg %p174
    %p181 = scmp.eq.s32.totalorder %s13, 1
    %p182 = por %p180, %p181
    %p183 = scmp.ne.s32.totalorder %s175, %s178
    %p184 = scmp.eq.s32.totalorder %s13, 0
    %p185 = por %p183, %p184
    %p186 = scmp.ne.s32.totalorder %s175, %s178
    %p187 = scmp.eq.s32.totalorder %s18, 1
    %p188 = por %p186, %p187
    %p189 = scmp.ne.s32.totalorder %s178, %s179
    %p190 = scmp.eq.s32.totalorder %s18, 0
    %p191 = por %p189, %p190
    %p192 = scmp.ne.s32.totalorder %s178, %s179
    %p193 = scmp.eq.s32.totalorder %s19, 1
    %p194 = por %p192, %p193
    %p196 = scmp.ne.s32.totalorder %s179, %s195
    %p197 = scmp.eq.s32.totalorder %s19, 0
    %p198 = por %p196, %p197
    %p199 = scmp.le.s32.totalorder 1, %s13
    %p200 = scmp.lt.s32.totalorder %s13, 3
    %p201 = pnand %p199, %p200
    %p202 = pneg %p201
    // Predicated region
    $region9: #{fused_mlp_chain.1} parent=5 // pred_check
      _
    $region10: #{fused_mlp_chain.1} parent=5 // pred_check_branch
      %204 = sbr.rel (%p201) target = $region12
    $region11: #{fused_mlp_chain.1} parent=5 // pred_region
      %s205 = ssub.s32 %s13, 1
      // Predicated region
      $region13: #{fused_mlp_chain.1} parent=11 // pred_check
        %p206 = pneg %p60
      $region14: #{fused_mlp_chain.1} parent=11 // pred_check_branch
        %208 = sbr.rel (%p206) target = $region16
      $region15: #{fused_mlp_chain.1} parent=11 // pred_region
        _
      $region16: #{fused_mlp_chain.1} parent=11 // pred_fallthru
        _
      // Predicated region
      $region17: #{fused_mlp_chain.1} parent=11 // pred_check
        %p209 = pneg %p81
      $region18: #{fused_mlp_chain.1} parent=11 // pred_check_branch
        %211 = sbr.rel (%p209) target = $region20
      $region19: #{fused_mlp_chain.1} parent=11 // pred_region
        _
      $region20: #{fused_mlp_chain.1} parent=11 // pred_fallthru
        _
      // Predicated region
      $region21: #{fused_mlp_chain.1} parent=11 // pred_check
        %p212 = pneg %p102
      $region22: #{fused_mlp_chain.1} parent=11 // pred_check_branch
        %214 = sbr.rel (%p212) target = $region24
      $region23: #{fused_mlp_chain.1} parent=11 // pred_region
        _
      $region24: #{fused_mlp_chain.1} parent=11 // pred_fallthru
        _
      // Predicated region
      $region25: #{fused_mlp_chain.1} parent=11 // pred_check
        %p215 = pneg %p123
      $region26: #{fused_mlp_chain.1} parent=11 // pred_check_branch
        %217 = sbr.rel (%p215) target = $region28
      $region27: #{fused_mlp_chain.1} parent=11 // pred_region
        _
      $region28: #{fused_mlp_chain.1} parent=11 // pred_fallthru
        _
      // Predicated region
      $region29: #{fused_mlp_chain.1} parent=11 // pred_check
        %p218 = pneg %p144
      $region30: #{fused_mlp_chain.1} parent=11 // pred_check_branch
        %220 = sbr.rel (%p218) target = $region32
      $region31: #{fused_mlp_chain.1} parent=11 // pred_region
        _
      $region32: #{fused_mlp_chain.1} parent=11 // pred_fallthru
        _
      // Predicated region
      $region33: #{fused_mlp_chain.1} parent=11 // pred_check
        %p221 = pneg %p165
      $region34: #{fused_mlp_chain.1} parent=11 // pred_check_branch
        %223 = sbr.rel (%p221) target = $region36
      $region35: #{fused_mlp_chain.1} parent=11 // pred_region
        _
      $region36: #{fused_mlp_chain.1} parent=11 // pred_fallthru
        _
    $region12: #{fused_mlp_chain.1} parent=5 // pred_fallthru
      _
    %p224 = scmp.lt.s32.totalorder %s13, 2
    // Predicated region
    $region37: #{fused_mlp_chain.1} parent=5 // pred_check
      %p225 = pneg %p224
    $region38: #{fused_mlp_chain.1} parent=5 // pred_check_branch
      %227 = sbr.rel (%p225) target = $region40
    $region39: #{fused_mlp_chain.1} parent=5 // pred_region
      // Predicated region
      $region41: #{fused_mlp_chain.1} parent=39 // pred_check
        %p228 = pneg %p33
      $region42: #{fused_mlp_chain.1} parent=39 // pred_check_branch
        %230 = sbr.rel (%p228) target = $region44
      $region43: #{fused_mlp_chain.1} parent=39 // pred_region
        %s231 = smul.u32 64, %s13
        %p232 = scmp.lt.s32.totalorder %s231, 127
        %s233 = scalar_select %p232, %s231, 127
        %s234 = smul.addr %s233, 8
        %s235 = scalar_lea.vmem %s0, %s234
        %s236 = smul.u32 64, %s13
      $region44: #{fused_mlp_chain.1} parent=39 // pred_fallthru
        _
    $region40: #{fused_mlp_chain.1} parent=5 // pred_fallthru
      _
    %p237 = scmp.le.s32.totalorder 1, %s13
    %p238 = scmp.lt.s32.totalorder %s13, 3
    %p239 = pnand %p237, %p238
    %p240 = pneg %p239
    // Predicated region
    $region45: #{fused_mlp_chain.1} parent=5 // pred_check
      _
    $region46: #{fused_mlp_chain.1} parent=5 // pred_check_branch
      %242 = sbr.rel (%p239) target = $region48
    $region47: #{fused_mlp_chain.1} parent=5 // pred_region
      %s243 = ssub.s32 %s13, 1
      %s244 = smul.u32 64, %s18
      %p245 = scmp.lt.s32.totalorder %s244, 127
      %s246 = scalar_select %p245, %s244, 127
      %s247 = smul.addr %s246, 8
      %s248 = scalar_lea.vmem %s0, %s247
      %p249 = pneg %p39
      %p250 = pneg %p36
      %p251 = pneg %p60
      %p252 = pneg %p57
      %p253 = pneg %p81
      %p254 = pneg %p78
      %p255 = pneg %p102
      %p256 = pneg %p99
      %p257 = pneg %p123
      %p258 = pneg %p120
      %p259 = pneg %p144
      %p260 = pneg %p141
      %p261 = pneg %p165
      %p262 = pneg %p162
      %p263 = pneg %p191
      %p264 = pneg %p188
      %s265 = smul.u32 64, %s18
      %p266 = scmp.lt.s32.totalorder %s265, 127
      %s267 = scalar_select %p266, %s265, 127
      %s268 = smul.addr %s267, 8
      %s269 = scalar_lea.vmem %s7, %s268
      %s270 = smul.u32 64, %s18
      %p271 = scmp.lt.s32.totalorder %s270, 127
      %s272 = scalar_select %p271, %s270, 127
      %s273 = smul.addr %s272, 8
      %s274 = scalar_lea.vmem %s0, %s273
      %s275 = smul.u32 64, %s18
      %s276 = smul.u32 64, %s18
      %p277 = scmp.lt.s32.totalorder %s276, 127
      %s278 = scalar_select %p277, %s276, 127
      %s279 = smul.addr %s278, 8
      %s280 = scalar_lea.vmem %s7, %s279
      %s281 = smul.u32 64, %s18
      %v283 = vld [vmem:[%s274] sm:$0xff]
      %v284 = vld [vmem:[%s274 + $0x8] sm:$0xff]
      %v285 = vld [vmem:[%s274 + $0x10] sm:$0xff]
      %v286 = vld [vmem:[%s274 + $0x18] sm:$0xff]
      %v287 = vld [vmem:[%s274 + $0x20] sm:$0xff]
      %v288 = vld [vmem:[%s274 + $0x28] sm:$0xff]
      %v289 = vld [vmem:[%s274 + $0x30] sm:$0xff]
      %v290 = vld [vmem:[%s274 + $0x38] sm:$0xff]
      %v291 = vld [vmem:[%s274 + $0x40] sm:$0xff]
      %v292 = vld [vmem:[%s274 + $0x48] sm:$0xff]
      %v293 = vld [vmem:[%s274 + $0x50] sm:$0xff]
      %v294 = vld [vmem:[%s274 + $0x58] sm:$0xff]
      %v295 = vld [vmem:[%s274 + $0x60] sm:$0xff]
      %v296 = vld [vmem:[%s274 + $0x68] sm:$0xff]
      %v297 = vld [vmem:[%s274 + $0x70] sm:$0xff]
      %v298 = vld [vmem:[%s274 + $0x78] sm:$0xff]
      %v299 = vld [vmem:[%s274 + $0x80] sm:$0xff]
      %v300 = vld [vmem:[%s274 + $0x88] sm:$0xff]
      %v301 = vld [vmem:[%s274 + $0x90] sm:$0xff]
      %v302 = vld [vmem:[%s274 + $0x98] sm:$0xff]
      %v303 = vld [vmem:[%s274 + $0xa0] sm:$0xff]
      %v304 = vld [vmem:[%s274 + $0xa8] sm:$0xff]
      %v305 = vld [vmem:[%s274 + $0xb0] sm:$0xff]
      %v306 = vld [vmem:[%s274 + $0xb8] sm:$0xff]
      %v307 = vld [vmem:[%s274 + $0xc0] sm:$0xff]
      %v308 = vld [vmem:[%s274 + $0xc8] sm:$0xff]
      %v309 = vld [vmem:[%s274 + $0xd0] sm:$0xff]
      %v310 = vld [vmem:[%s274 + $0xd8] sm:$0xff]
      %v311 = vld [vmem:[%s274 + $0xe0] sm:$0xff]
      %v312 = vld [vmem:[%s274 + $0xe8] sm:$0xff]
      %v313 = vld [vmem:[%s274 + $0xf0] sm:$0xff]
      %v314 = vld [vmem:[%s274 + $0xf8] sm:$0xff]
      %v315 = vld [vmem:[%s274 + $0x100] sm:$0xff]
      %v316 = vld [vmem:[%s274 + $0x108] sm:$0xff]
      %v317 = vld [vmem:[%s274 + $0x110] sm:$0xff]
      %v318 = vld [vmem:[%s274 + $0x118] sm:$0xff]
      %v319 = vld [vmem:[%s274 + $0x120] sm:$0xff]
      %v320 = vld [vmem:[%s274 + $0x128] sm:$0xff]
      %v321 = vld [vmem:[%s274 + $0x130] sm:$0xff]
      %v322 = vld [vmem:[%s274 + $0x138] sm:$0xff]
      %v323 = vld [vmem:[%s274 + $0x140] sm:$0xff]
      %v324 = vld [vmem:[%s274 + $0x148] sm:$0xff]
      %v325 = vld [vmem:[%s274 + $0x150] sm:$0xff]
      %v326 = vld [vmem:[%s274 + $0x158] sm:$0xff]
      %v327 = vld [vmem:[%s274 + $0x160] sm:$0xff]
      %v328 = vld [vmem:[%s274 + $0x168] sm:$0xff]
      %v329 = vld [vmem:[%s274 + $0x170] sm:$0xff]
      %v330 = vld [vmem:[%s274 + $0x178] sm:$0xff]
      %v331 = vld [vmem:[%s274 + $0x180] sm:$0xff]
      %v332 = vld [vmem:[%s274 + $0x188] sm:$0xff]
      %v333 = vld [vmem:[%s274 + $0x190] sm:$0xff]
      %v334 = vld [vmem:[%s274 + $0x198] sm:$0xff]
      %v335 = vld [vmem:[%s274 + $0x1a0] sm:$0xff]
      %v336 = vld [vmem:[%s274 + $0x1a8] sm:$0xff]
      %v337 = vld [vmem:[%s274 + $0x1b0] sm:$0xff]
      %v338 = vld [vmem:[%s274 + $0x1b8] sm:$0xff]
      %v339 = vld [vmem:[%s274 + $0x1c0] sm:$0xff]
      %v340 = vld [vmem:[%s274 + $0x1c8] sm:$0xff]
      %v341 = vld [vmem:[%s274 + $0x1d0] sm:$0xff]
      %v342 = vld [vmem:[%s274 + $0x1d8] sm:$0xff]
      %v343 = vld [vmem:[%s274 + $0x1e0] sm:$0xff]
      %v344 = vld [vmem:[%s274 + $0x1e8] sm:$0xff]
      %v345 = vld [vmem:[%s274 + $0x1f0] sm:$0xff]
      %v346 = vld [vmem:[%s274 + $0x1f8] sm:$0xff]
      %v347 = vpack.c.bf16 %v284, %v283
      %v348 = vpack.c.bf16 %v286, %v285
      %v349 = vpack.c.bf16 %v288, %v287
      %v350 = vpack.c.bf16 %v290, %v289
      %v351 = vpack.c.bf16 %v292, %v291
      %v352 = vpack.c.bf16 %v294, %v293
      %v353 = vpack.c.bf16 %v296, %v295
      %v354 = vpack.c.bf16 %v298, %v297
      %v355 = vpack.c.bf16 %v300, %v299
      %v356 = vpack.c.bf16 %v302, %v301
      %v357 = vpack.c.bf16 %v304, %v303
      %v358 = vpack.c.bf16 %v306, %v305
      %v359 = vpack.c.bf16 %v308, %v307
      %v360 = vpack.c.bf16 %v310, %v309
      %v361 = vpack.c.bf16 %v312, %v311
      %v362 = vpack.c.bf16 %v314, %v313
      %v363 = vpack.c.bf16 %v316, %v315
      %v364 = vpack.c.bf16 %v318, %v317
      %v365 = vpack.c.bf16 %v320, %v319
      %v366 = vpack.c.bf16 %v322, %v321
      %v367 = vpack.c.bf16 %v324, %v323
      %v368 = vpack.c.bf16 %v326, %v325
      %v369 = vpack.c.bf16 %v328, %v327
      %v370 = vpack.c.bf16 %v330, %v329
      %v371 = vpack.c.bf16 %v332, %v331
      %v372 = vpack.c.bf16 %v334, %v333
      %v373 = vpack.c.bf16 %v336, %v335
      %v374 = vpack.c.bf16 %v338, %v337
      %v375 = vpack.c.bf16 %v340, %v339
      %v376 = vpack.c.bf16 %v342, %v341
      %v377 = vpack.c.bf16 %v344, %v343
      %v378 = vpack.c.bf16 %v346, %v345
      %v379 = vld [vmem:[%s1] sm:$0xf]
      %v380 = vld [vmem:[%s1 + $0x4] sm:$0xf]
      %v381 = vld [vmem:[%s2] sm:$0x1]
      %v383 = vperm.slane %v381, 0
      %v387 = vunpack.c.l.b16 %v379
      %v388 = vunpack.c.l.b16 %v380
      %v389 = vpack.c.b16 %v388, %v387
      %vm391 = vcmask 130048
      %v393 = vsel %vm391, %v347, 0
      %v396 = vsel %vm391, %v348, 0
      %v399 = vsel %vm391, %v349, 0
      %v402 = vsel %vm391, %v350, 0
      %v405 = vsel %vm391, %v351, 0
      %v408 = vsel %vm391, %v352, 0
      %v411 = vsel %vm391, %v353, 0
      %v414 = vsel %vm391, %v354, 0
      %v417 = vsel %vm391, %v355, 0
      %v420 = vsel %vm391, %v356, 0
      %v423 = vsel %vm391, %v357, 0
      %v426 = vsel %vm391, %v358, 0
      %v429 = vsel %vm391, %v359, 0
      %v432 = vsel %vm391, %v360, 0
      %v435 = vsel %vm391, %v361, 0
      %v438 = vsel %vm391, %v362, 0
      %v441 = vsel %vm391, %v363, 0
      %v444 = vsel %vm391, %v364, 0
      %v447 = vsel %vm391, %v365, 0
      %v450 = vsel %vm391, %v366, 0
      %v453 = vsel %vm391, %v367, 0
      %v456 = vsel %vm391, %v368, 0
      %v459 = vsel %vm391, %v369, 0
      %v462 = vsel %vm391, %v370, 0
      %v465 = vsel %vm391, %v371, 0
      %v468 = vsel %vm391, %v372, 0
      %v471 = vsel %vm391, %v373, 0
      %v474 = vsel %vm391, %v374, 0
      %v477 = vsel %vm391, %v375, 0
      %v480 = vsel %vm391, %v376, 0
      %v483 = vsel %vm391, %v377, 0
      %v486 = vsel %vm391, %v378, 0
      %488 = vmatpush.bf16.msra.mxu0 0
      %489 = vmatpush.bf16.msra.mxu0 0
      %490 = vmatpush.bf16.msra.mxu0 0
      %491 = vmatpush.bf16.msra.mxu0 0
      %492 = vmatpush.bf16.msra.mxu0 0
      %493 = vmatpush.bf16.msra.mxu0 0
      %494 = vmatpush.bf16.msra.mxu0 0
      %495 = vmatpush.bf16.msra.mxu0 %v389
      %496 = vmatmul.bf16.gmra.mxu0 %v393
      %v497 = vpop.f32.mrf.mxu0
      %v498 = vadd.f32 %v383, %v497
      %v499 = vpop.f32.mrf.mxu0
      %v500 = vadd.f32 %v383, %v499
      %501 = vmatmul.bf16.gmra.mxu0 %v396
      %v502 = vpop.f32.mrf.mxu0
      %v503 = vadd.f32 %v383, %v502
      %v504 = vpop.f32.mrf.mxu0
      %v505 = vadd.f32 %v383, %v504
      %506 = vmatmul.bf16.gmra.mxu0 %v399
      %v507 = vpop.f32.mrf.mxu0
      %v508 = vadd.f32 %v383, %v507
      %v509 = vpop.f32.mrf.mxu0
      %v510 = vadd.f32 %v383, %v509
      %511 = vmatmul.bf16.gmra.mxu0 %v402
      %v512 = vpop.f32.mrf.mxu0
      %v513 = vadd.f32 %v383, %v512
      %v514 = vpop.f32.mrf.mxu0
      %v515 = vadd.f32 %v383, %v514
      %516 = vmatmul.bf16.gmra.mxu0 %v405
      %v517 = vpop.f32.mrf.mxu0
      %v518 = vadd.f32 %v383, %v517
      %v519 = vpop.f32.mrf.mxu0
      %v520 = vadd.f32 %v383, %v519
      %521 = vmatmul.bf16.gmra.mxu0 %v408
      %v522 = vpop.f32.mrf.mxu0
      %v523 = vadd.f32 %v383, %v522
      %v524 = vpop.f32.mrf.mxu0
      %v525 = vadd.f32 %v383, %v524
      %526 = vmatmul.bf16.gmra.mxu0 %v411
      %v527 = vpop.f32.mrf.mxu0
      %v528 = vadd.f32 %v383, %v527
      %v529 = vpop.f32.mrf.mxu0
      %v530 = vadd.f32 %v383, %v529
      %531 = vmatmul.bf16.gmra.mxu0 %v414
      %v532 = vpop.f32.mrf.mxu0
      %v533 = vadd.f32 %v383, %v532
      %v534 = vpop.f32.mrf.mxu0
      %v535 = vadd.f32 %v383, %v534
      %536 = vmatmul.bf16.gmra.mxu0 %v417
      %v537 = vpop.f32.mrf.mxu0
      %v538 = vadd.f32 %v383, %v537
      %v539 = vpop.f32.mrf.mxu0
      %v540 = vadd.f32 %v383, %v539
      %541 = vmatmul.bf16.gmra.mxu0 %v420
      %v542 = vpop.f32.mrf.mxu0
      %v543 = vadd.f32 %v383, %v542
      %v544 = vpop.f32.mrf.mxu0
      %v545 = vadd.f32 %v383, %v544
      %546 = vmatmul.bf16.gmra.mxu0 %v423
      %v547 = vpop.f32.mrf.mxu0
      %v548 = vadd.f32 %v383, %v547
      %v549 = vpop.f32.mrf.mxu0
      %v550 = vadd.f32 %v383, %v549
      %551 = vmatmul.bf16.gmra.mxu0 %v426
      %v552 = vpop.f32.mrf.mxu0
      %v553 = vadd.f32 %v383, %v552
      %v554 = vpop.f32.mrf.mxu0
      %v555 = vadd.f32 %v383, %v554
      %556 = vmatmul.bf16.gmra.mxu0 %v429
      %v557 = vpop.f32.mrf.mxu0
      %v558 = vadd.f32 %v383, %v557
      %v559 = vpop.f32.mrf.mxu0
      %v560 = vadd.f32 %v383, %v559
      %561 = vmatmul.bf16.gmra.mxu0 %v432
      %v562 = vpop.f32.mrf.mxu0
      %v563 = vadd.f32 %v383, %v562
      %v564 = vpop.f32.mrf.mxu0
      %v565 = vadd.f32 %v383, %v564
      %566 = vmatmul.bf16.gmra.mxu0 %v435
      %v567 = vpop.f32.mrf.mxu0
      %v568 = vadd.f32 %v383, %v567
      %v569 = vpop.f32.mrf.mxu0
      %v570 = vadd.f32 %v383, %v569
      %571 = vmatmul.bf16.gmra.mxu0 %v438
      %v572 = vpop.f32.mrf.mxu0
      %v573 = vadd.f32 %v383, %v572
      %v574 = vpop.f32.mrf.mxu0
      %v575 = vadd.f32 %v383, %v574
      %576 = vmatmul.bf16.gmra.mxu0 %v441
      %v577 = vpop.f32.mrf.mxu0
      %v578 = vadd.f32 %v383, %v577
      %v579 = vpop.f32.mrf.mxu0
      %v580 = vadd.f32 %v383, %v579
      %581 = vmatmul.bf16.gmra.mxu0 %v444
      %v582 = vpop.f32.mrf.mxu0
      %v583 = vadd.f32 %v383, %v582
      %v584 = vpop.f32.mrf.mxu0
      %v585 = vadd.f32 %v383, %v584
      %586 = vmatmul.bf16.gmra.mxu0 %v447
      %v587 = vpop.f32.mrf.mxu0
      %v588 = vadd.f32 %v383, %v587
      %v589 = vpop.f32.mrf.mxu0
      %v590 = vadd.f32 %v383, %v589
      %591 = vmatmul.bf16.gmra.mxu0 %v450
      %v592 = vpop.f32.mrf.mxu0
      %v593 = vadd.f32 %v383, %v592
      %v594 = vpop.f32.mrf.mxu0
      %v595 = vadd.f32 %v383, %v594
      %596 = vmatmul.bf16.gmra.mxu0 %v453
      %v597 = vpop.f32.mrf.mxu0
      %v598 = vadd.f32 %v383, %v597
      %v599 = vpop.f32.mrf.mxu0
      %v600 = vadd.f32 %v383, %v599
      %601 = vmatmul.bf16.gmra.mxu0 %v456
      %v602 = vpop.f32.mrf.mxu0
      %v603 = vadd.f32 %v383, %v602
      %v604 = vpop.f32.mrf.mxu0
      %v605 = vadd.f32 %v383, %v604
      %606 = vmatmul.bf16.gmra.mxu0 %v459
      %v607 = vpop.f32.mrf.mxu0
      %v608 = vadd.f32 %v383, %v607
      %v609 = vpop.f32.mrf.mxu0
      %v610 = vadd.f32 %v383, %v609
      %611 = vmatmul.bf16.gmra.mxu0 %v462
      %v612 = vpop.f32.mrf.mxu0
      %v613 = vadd.f32 %v383, %v612
      %v614 = vpop.f32.mrf.mxu0
      %v615 = vadd.f32 %v383, %v614
      %616 = vmatmul.bf16.gmra.mxu0 %v465
      %v617 = vpop.f32.mrf.mxu0
      %v618 = vadd.f32 %v383, %v617
      %v619 = vpop.f32.mrf.mxu0
      %v620 = vadd.f32 %v383, %v619
      %621 = vmatmul.bf16.gmra.mxu0 %v468
      %v622 = vpop.f32.mrf.mxu0
      %v623 = vadd.f32 %v383, %v622
      %v624 = vpop.f32.mrf.mxu0
      %v625 = vadd.f32 %v383, %v624
      %626 = vmatmul.bf16.gmra.mxu0 %v471
      %v627 = vpop.f32.mrf.mxu0
      %v628 = vadd.f32 %v383, %v627
      %v629 = vpop.f32.mrf.mxu0
      %v630 = vadd.f32 %v383, %v629
      %631 = vmatmul.bf16.gmra.mxu0 %v474
      %v632 = vpop.f32.mrf.mxu0
      %v633 = vadd.f32 %v383, %v632
      %v634 = vpop.f32.mrf.mxu0
      %v635 = vadd.f32 %v383, %v634
      %636 = vmatmul.bf16.gmra.mxu0 %v477
      %v637 = vpop.f32.mrf.mxu0
      %v638 = vadd.f32 %v383, %v637
      %v639 = vpop.f32.mrf.mxu0
      %v640 = vadd.f32 %v383, %v639
      %641 = vmatmul.bf16.gmra.mxu0 %v480
      %v642 = vpop.f32.mrf.mxu0
      %v643 = vadd.f32 %v383, %v642
      %v644 = vpop.f32.mrf.mxu0
      %v645 = vadd.f32 %v383, %v644
      %646 = vmatmul.bf16.gmra.mxu0 %v483
      %v647 = vpop.f32.mrf.mxu0
      %v648 = vadd.f32 %v383, %v647
      %v649 = vpop.f32.mrf.mxu0
      %v650 = vadd.f32 %v383, %v649
      %651 = vmatmul.bf16.gmra.mxu0 %v486
      %v652 = vpop.f32.mrf.mxu0
      %v653 = vadd.f32 %v383, %v652
      %v654 = vpop.f32.mrf.mxu0
      %v655 = vadd.f32 %v383, %v654
      %656 = vdwg.mxu0
      %vm657 = vcmp.ge.f32.partialorder %v498, 0.0
      %vm658 = vcmp.ge.f32.partialorder %v500, 0.0
      %vm659 = vcmp.ge.f32.partialorder %v503, 0.0
      %vm660 = vcmp.ge.f32.partialorder %v505, 0.0
      %vm661 = vcmp.ge.f32.partialorder %v508, 0.0
      %vm662 = vcmp.ge.f32.partialorder %v510, 0.0
      %vm663 = vcmp.ge.f32.partialorder %v513, 0.0
      %vm664 = vcmp.ge.f32.partialorder %v515, 0.0
      %vm665 = vcmp.ge.f32.partialorder %v518, 0.0
      %vm666 = vcmp.ge.f32.partialorder %v520, 0.0
      %vm667 = vcmp.ge.f32.partialorder %v523, 0.0
      %vm668 = vcmp.ge.f32.partialorder %v525, 0.0
      %vm669 = vcmp.ge.f32.partialorder %v528, 0.0
      %vm670 = vcmp.ge.f32.partialorder %v530, 0.0
      %vm671 = vcmp.ge.f32.partialorder %v533, 0.0
      %vm672 = vcmp.ge.f32.partialorder %v535, 0.0
      %vm673 = vcmp.ge.f32.partialorder %v538, 0.0
      %vm674 = vcmp.ge.f32.partialorder %v540, 0.0
      %vm675 = vcmp.ge.f32.partialorder %v543, 0.0
      %vm676 = vcmp.ge.f32.partialorder %v545, 0.0
      %vm677 = vcmp.ge.f32.partialorder %v548, 0.0
      %vm678 = vcmp.ge.f32.partialorder %v550, 0.0
      %vm679 = vcmp.ge.f32.partialorder %v553, 0.0
      %vm680 = vcmp.ge.f32.partialorder %v555, 0.0
      %vm681 = vcmp.ge.f32.partialorder %v558, 0.0
      %vm682 = vcmp.ge.f32.partialorder %v560, 0.0
      %vm683 = vcmp.ge.f32.partialorder %v563, 0.0
      %vm684 = vcmp.ge.f32.partialorder %v565, 0.0
      %vm685 = vcmp.ge.f32.partialorder %v568, 0.0
      %vm686 = vcmp.ge.f32.partialorder %v570, 0.0
      %vm687 = vcmp.ge.f32.partialorder %v573, 0.0
      %vm688 = vcmp.ge.f32.partialorder %v575, 0.0
      %vm689 = vcmp.ge.f32.partialorder %v578, 0.0
      %vm690 = vcmp.ge.f32.partialorder %v580, 0.0
      %vm691 = vcmp.ge.f32.partialorder %v583, 0.0
      %vm692 = vcmp.ge.f32.partialorder %v585, 0.0
      %vm693 = vcmp.ge.f32.partialorder %v588, 0.0
      %vm694 = vcmp.ge.f32.partialorder %v590, 0.0
      %vm695 = vcmp.ge.f32.partialorder %v593, 0.0
      %vm696 = vcmp.ge.f32.partialorder %v595, 0.0
      %vm697 = vcmp.ge.f32.partialorder %v598, 0.0
      %vm698 = vcmp.ge.f32.partialorder %v600, 0.0
      %vm699 = vcmp.ge.f32.partialorder %v603, 0.0
      %vm700 = vcmp.ge.f32.partialorder %v605, 0.0
      %vm701 = vcmp.ge.f32.partialorder %v608, 0.0
      %vm702 = vcmp.ge.f32.partialorder %v610, 0.0
      %vm703 = vcmp.ge.f32.partialorder %v613, 0.0
      %vm704 = vcmp.ge.f32.partialorder %v615, 0.0
      %vm705 = vcmp.ge.f32.partialorder %v618, 0.0
      %vm706 = vcmp.ge.f32.partialorder %v620, 0.0
      %vm707 = vcmp.ge.f32.partialorder %v623, 0.0
      %vm708 = vcmp.ge.f32.partialorder %v625, 0.0
      %vm709 = vcmp.ge.f32.partialorder %v628, 0.0
      %vm710 = vcmp.ge.f32.partialorder %v630, 0.0
      %vm711 = vcmp.ge.f32.partialorder %v633, 0.0
      %vm712 = vcmp.ge.f32.partialorder %v635, 0.0
      %vm713 = vcmp.ge.f32.partialorder %v638, 0.0
      %vm714 = vcmp.ge.f32.partialorder %v640, 0.0
      %vm715 = vcmp.ge.f32.partialorder %v643, 0.0
      %vm716 = vcmp.ge.f32.partialorder %v645, 0.0
      %vm717 = vcmp.ge.f32.partialorder %v648, 0.0
      %vm718 = vcmp.ge.f32.partialorder %v650, 0.0
      %vm719 = vcmp.ge.f32.partialorder %v653, 0.0
      %vm720 = vcmp.ge.f32.partialorder %v655, 0.0
      %v721 = vld [vmem:[%s3] sm:$0x1]
      %v723 = vperm.slane %v721, 0
      %v725 = vmul.f32 %v723, %v498
      %v726 = vmul.f32 %v723, %v500
      %v727 = vmul.f32 %v723, %v503
      %v728 = vmul.f32 %v723, %v505
      %v729 = vmul.f32 %v723, %v508
      %v730 = vmul.f32 %v723, %v510
      %v731 = vmul.f32 %v723, %v513
      %v732 = vmul.f32 %v723, %v515
      %v733 = vmul.f32 %v723, %v518
      %v734 = vmul.f32 %v723, %v520
      %v735 = vmul.f32 %v723, %v523
      %v736 = vmul.f32 %v723, %v525
      %v737 = vmul.f32 %v723, %v528
      %v738 = vmul.f32 %v723, %v530
      %v739 = vmul.f32 %v723, %v533
      %v740 = vmul.f32 %v723, %v535
      %v741 = vmul.f32 %v723, %v538
      %v742 = vmul.f32 %v723, %v540
      %v743 = vmul.f32 %v723, %v543
      %v744 = vmul.f32 %v723, %v545
      %v745 = vmul.f32 %v723, %v548
      %v746 = vmul.f32 %v723, %v550
      %v747 = vmul.f32 %v723, %v553
      %v748 = vmul.f32 %v723, %v555
      %v749 = vmul.f32 %v723, %v558
      %v750 = vmul.f32 %v723, %v560
      %v751 = vmul.f32 %v723, %v563
      %v752 = vmul.f32 %v723, %v565
      %v753 = vmul.f32 %v723, %v568
      %v754 = vmul.f32 %v723, %v570
      %v755 = vmul.f32 %v723, %v573
      %v756 = vmul.f32 %v723, %v575
      %v757 = vmul.f32 %v723, %v578
      %v758 = vmul.f32 %v723, %v580
      %v759 = vmul.f32 %v723, %v583
      %v760 = vmul.f32 %v723, %v585
      %v761 = vmul.f32 %v723, %v588
      %v762 = vmul.f32 %v723, %v590
      %v763 = vmul.f32 %v723, %v593
      %v764 = vmul.f32 %v723, %v595
      %v765 = vmul.f32 %v723, %v598
      %v766 = vmul.f32 %v723, %v600
      %v767 = vmul.f32 %v723, %v603
      %v768 = vmul.f32 %v723, %v605
      %v769 = vmul.f32 %v723, %v608
      %v770 = vmul.f32 %v723, %v610
      %v771 = vmul.f32 %v723, %v613
      %v772 = vmul.f32 %v723, %v615
      %v773 = vmul.f32 %v723, %v618
      %v774 = vmul.f32 %v723, %v620
      %v775 = vmul.f32 %v723, %v623
      %v776 = vmul.f32 %v723, %v625
      %v777 = vmul.f32 %v723, %v628
      %v778 = vmul.f32 %v723, %v630
      %v779 = vmul.f32 %v723, %v633
      %v780 = vmul.f32 %v723, %v635
      %v781 = vmul.f32 %v723, %v638
      %v782 = vmul.f32 %v723, %v640
      %v783 = vmul.f32 %v723, %v643
      %v784 = vmul.f32 %v723, %v645
      %v785 = vmul.f32 %v723, %v648
      %v786 = vmul.f32 %v723, %v650
      %v787 = vmul.f32 %v723, %v653
      %v788 = vmul.f32 %v723, %v655
      %v789 = vsel %vm657, %v498, %v725
      %v790 = vsel %vm658, %v500, %v726
      %v791 = vsel %vm659, %v503, %v727
      %v792 = vsel %vm660, %v505, %v728
      %v793 = vsel %vm661, %v508, %v729
      %v794 = vsel %vm662, %v510, %v730
      %v795 = vsel %vm663, %v513, %v731
      %v796 = vsel %vm664, %v515, %v732
      %v797 = vsel %vm665, %v518, %v733
      %v798 = vsel %vm666, %v520, %v734
      %v799 = vsel %vm667, %v523, %v735
      %v800 = vsel %vm668, %v525, %v736
      %v801 = vsel %vm669, %v528, %v737
      %v802 = vsel %vm670, %v530, %v738
      %v803 = vsel %vm671, %v533, %v739
      %v804 = vsel %vm672, %v535, %v740
      %v805 = vsel %vm673, %v538, %v741
      %v806 = vsel %vm674, %v540, %v742
      %v807 = vsel %vm675, %v543, %v743
      %v808 = vsel %vm676, %v545, %v744
      %v809 = vsel %vm677, %v548, %v745
      %v810 = vsel %vm678, %v550, %v746
      %v811 = vsel %vm679, %v553, %v747
      %v812 = vsel %vm680, %v555, %v748
      %v813 = vsel %vm681, %v558, %v749
      %v814 = vsel %vm682, %v560, %v750
      %v815 = vsel %vm683, %v563, %v751
      %v816 = vsel %vm684, %v565, %v752
      %v817 = vsel %vm685, %v568, %v753
      %v818 = vsel %vm686, %v570, %v754
      %v819 = vsel %vm687, %v573, %v755
      %v820 = vsel %vm688, %v575, %v756
      %v821 = vsel %vm689, %v578, %v757
      %v822 = vsel %vm690, %v580, %v758
      %v823 = vsel %vm691, %v583, %v759
      %v824 = vsel %vm692, %v585, %v760
      %v825 = vsel %vm693, %v588, %v761
      %v826 = vsel %vm694, %v590, %v762
      %v827 = vsel %vm695, %v593, %v763
      %v828 = vsel %vm696, %v595, %v764
      %v829 = vsel %vm697, %v598, %v765
      %v830 = vsel %vm698, %v600, %v766
      %v831 = vsel %vm699, %v603, %v767
      %v832 = vsel %vm700, %v605, %v768
      %v833 = vsel %vm701, %v608, %v769
      %v834 = vsel %vm702, %v610, %v770
      %v835 = vsel %vm703, %v613, %v771
      %v836 = vsel %vm704, %v615, %v772
      %v837 = vsel %vm705, %v618, %v773
      %v838 = vsel %vm706, %v620, %v774
      %v839 = vsel %vm707, %v623, %v775
      %v840 = vsel %vm708, %v625, %v776
      %v841 = vsel %vm709, %v628, %v777
      %v842 = vsel %vm710, %v630, %v778
      %v843 = vsel %vm711, %v633, %v779
      %v844 = vsel %vm712, %v635, %v780
      %v845 = vsel %vm713, %v638, %v781
      %v846 = vsel %vm714, %v640, %v782
      %v847 = vsel %vm715, %v643, %v783
      %v848 = vsel %vm716, %v645, %v784
      %v849 = vsel %vm717, %v648, %v785
      %v850 = vsel %vm718, %v650, %v786
      %v851 = vsel %vm719, %v653, %v787
      %v852 = vsel %vm720, %v655, %v788
      %v853 = vpack.c.bf16 %v790, %v789
      %v854 = vpack.c.bf16 %v792, %v791
      %v855 = vpack.c.bf16 %v794, %v793
      %v856 = vpack.c.bf16 %v796, %v795
      %v857 = vpack.c.bf16 %v798, %v797
      %v858 = vpack.c.bf16 %v800, %v799
      %v859 = vpack.c.bf16 %v802, %v801
      %v860 = vpack.c.bf16 %v804, %v803
      %v861 = vpack.c.bf16 %v806, %v805
      %v862 = vpack.c.bf16 %v808, %v807
      %v863 = vpack.c.bf16 %v810, %v809
      %v864 = vpack.c.bf16 %v812, %v811
      %v865 = vpack.c.bf16 %v814, %v813
      %v866 = vpack.c.bf16 %v816, %v815
      %v867 = vpack.c.bf16 %v818, %v817
      %v868 = vpack.c.bf16 %v820, %v819
      %v869 = vpack.c.bf16 %v822, %v821
      %v870 = vpack.c.bf16 %v824, %v823
      %v871 = vpack.c.bf16 %v826, %v825
      %v872 = vpack.c.bf16 %v828, %v827
      %v873 = vpack.c.bf16 %v830, %v829
      %v874 = vpack.c.bf16 %v832, %v831
      %v875 = vpack.c.bf16 %v834, %v833
      %v876 = vpack.c.bf16 %v836, %v835
      %v877 = vpack.c.bf16 %v838, %v837
      %v878 = vpack.c.bf16 %v840, %v839
      %v879 = vpack.c.bf16 %v842, %v841
      %v880 = vpack.c.bf16 %v844, %v843
      %v881 = vpack.c.bf16 %v846, %v845
      %v882 = vpack.c.bf16 %v848, %v847
      %v883 = vpack.c.bf16 %v850, %v849
      %v884 = vpack.c.bf16 %v852, %v851
      %v885 = vld [vmem:[%s4] sm:$0xf]
      %v886 = vld [vmem:[%s4 + $0x4] sm:$0xf]
      %v887 = vld [vmem:[%s4 + $0x8] sm:$0xf]
      %v888 = vld [vmem:[%s4 + $0xc] sm:$0xf]
      %v889 = vld [vmem:[%s5] sm:$0x1]
      %v891 = vperm.slane %v889, 0
      %v897 = vunpack.c.l.b16 %v885
      %v898 = vunpack.c.l.b16 %v886
      %v899 = vunpack.c.l.b16 %v887
      %v900 = vunpack.c.l.b16 %v888
      %v901 = vpack.c.b16 %v898, %v897
      %v902 = vpack.c.b16 %v900, %v899
      %vm905 = vcmask 261120
      %v907 = vsel %vm905, %v853, 0
      %v910 = vsel %vm905, %v854, 0
      %v913 = vsel %vm905, %v855, 0
      %v916 = vsel %vm905, %v856, 0
      %v919 = vsel %vm905, %v857, 0
      %v922 = vsel %vm905, %v858, 0
      %v925 = vsel %vm905, %v859, 0
      %v928 = vsel %vm905, %v860, 0
      %v931 = vsel %vm905, %v861, 0
      %v934 = vsel %vm905, %v862, 0
      %v937 = vsel %vm905, %v863, 0
      %v940 = vsel %vm905, %v864, 0
      %v943 = vsel %vm905, %v865, 0
      %v946 = vsel %vm905, %v866, 0
      %v949 = vsel %vm905, %v867, 0
      %v952 = vsel %vm905, %v868, 0
      %v955 = vsel %vm905, %v869, 0
      %v958 = vsel %vm905, %v870, 0
      %v961 = vsel %vm905, %v871, 0
      %v964 = vsel %vm905, %v872, 0
      %v967 = vsel %vm905, %v873, 0
      %v970 = vsel %vm905, %v874, 0
      %v973 = vsel %vm905, %v875, 0
      %v976 = vsel %vm905, %v876, 0
      %v979 = vsel %vm905, %v877, 0
      %v982 = vsel %vm905, %v878, 0
      %v985 = vsel %vm905, %v879, 0
      %v988 = vsel %vm905, %v880, 0
      %v991 = vsel %vm905, %v881, 0
      %v994 = vsel %vm905, %v882, 0
      %v997 = vsel %vm905, %v883, 0
      %v1000 = vsel %vm905, %v884, 0
      %1002 = vmatpush.bf16.msra.mxu0 0
      %1003 = vmatpush.bf16.msra.mxu0 0
      %1004 = vmatpush.bf16.msra.mxu0 0
      %1005 = vmatpush.bf16.msra.mxu0 0
      %1006 = vmatpush.bf16.msra.mxu0 0
      %1007 = vmatpush.bf16.msra.mxu0 0
      %1008 = vmatpush.bf16.msra.mxu0 %v902
      %1009 = vmatpush.bf16.msra.mxu0 %v901
      %1010 = vmatmul.bf16.gmra.mxu0 %v907
      %v1011 = vpop.f32.mrf.mxu0
      %v1012 = vadd.f32 %v891, %v1011
      %v1013 = vpop.f32.mrf.mxu0
      %v1014 = vadd.f32 %v891, %v1013
      %1015 = vmatmul.bf16.gmra.mxu0 %v910
      %v1016 = vpop.f32.mrf.mxu0
      %v1017 = vadd.f32 %v891, %v1016
      %v1018 = vpop.f32.mrf.mxu0
      %v1019 = vadd.f32 %v891, %v1018
      %1020 = vmatmul.bf16.gmra.mxu0 %v913
      %v1021 = vpop.f32.mrf.mxu0
      %v1022 = vadd.f32 %v891, %v1021
      %v1023 = vpop.f32.mrf.mxu0
      %v1024 = vadd.f32 %v891, %v1023
      %1025 = vmatmul.bf16.gmra.mxu0 %v916
      %v1026 = vpop.f32.mrf.mxu0
      %v1027 = vadd.f32 %v891, %v1026
      %v1028 = vpop.f32.mrf.mxu0
      %v1029 = vadd.f32 %v891, %v1028
      %1030 = vmatmul.bf16.gmra.mxu0 %v919
      %v1031 = vpop.f32.mrf.mxu0
      %v1032 = vadd.f32 %v891, %v1031
      %v1033 = vpop.f32.mrf.mxu0
      %v1034 = vadd.f32 %v891, %v1033
      %1035 = vmatmul.bf16.gmra.mxu0 %v922
      %v1036 = vpop.f32.mrf.mxu0
      %v1037 = vadd.f32 %v891, %v1036
      %v1038 = vpop.f32.mrf.mxu0
      %v1039 = vadd.f32 %v891, %v1038
      %1040 = vmatmul.bf16.gmra.mxu0 %v925
      %v1041 = vpop.f32.mrf.mxu0
      %v1042 = vadd.f32 %v891, %v1041
      %v1043 = vpop.f32.mrf.mxu0
      %v1044 = vadd.f32 %v891, %v1043
      %1045 = vmatmul.bf16.gmra.mxu0 %v928
      %v1046 = vpop.f32.mrf.mxu0
      %v1047 = vadd.f32 %v891, %v1046
      %v1048 = vpop.f32.mrf.mxu0
      %v1049 = vadd.f32 %v891, %v1048
      %1050 = vmatmul.bf16.gmra.mxu0 %v931
      %v1051 = vpop.f32.mrf.mxu0
      %v1052 = vadd.f32 %v891, %v1051
      %v1053 = vpop.f32.mrf.mxu0
      %v1054 = vadd.f32 %v891, %v1053
      %1055 = vmatmul.bf16.gmra.mxu0 %v934
      %v1056 = vpop.f32.mrf.mxu0
      %v1057 = vadd.f32 %v891, %v1056
      %v1058 = vpop.f32.mrf.mxu0
      %v1059 = vadd.f32 %v891, %v1058
      %1060 = vmatmul.bf16.gmra.mxu0 %v937
      %v1061 = vpop.f32.mrf.mxu0
      %v1062 = vadd.f32 %v891, %v1061
      %v1063 = vpop.f32.mrf.mxu0
      %v1064 = vadd.f32 %v891, %v1063
      %1065 = vmatmul.bf16.gmra.mxu0 %v940
      %v1066 = vpop.f32.mrf.mxu0
      %v1067 = vadd.f32 %v891, %v1066
      %v1068 = vpop.f32.mrf.mxu0
      %v1069 = vadd.f32 %v891, %v1068
      %1070 = vmatmul.bf16.gmra.mxu0 %v943
      %v1071 = vpop.f32.mrf.mxu0
      %v1072 = vadd.f32 %v891, %v1071
      %v1073 = vpop.f32.mrf.mxu0
      %v1074 = vadd.f32 %v891, %v1073
      %1075 = vmatmul.bf16.gmra.mxu0 %v946
      %v1076 = vpop.f32.mrf.mxu0
      %v1077 = vadd.f32 %v891, %v1076
      %v1078 = vpop.f32.mrf.mxu0
      %v1079 = vadd.f32 %v891, %v1078
      %1080 = vmatmul.bf16.gmra.mxu0 %v949
      %v1081 = vpop.f32.mrf.mxu0
      %v1082 = vadd.f32 %v891, %v1081
      %v1083 = vpop.f32.mrf.mxu0
      %v1084 = vadd.f32 %v891, %v1083
      %1085 = vmatmul.bf16.gmra.mxu0 %v952
      %v1086 = vpop.f32.mrf.mxu0
      %v1087 = vadd.f32 %v891, %v1086
      %v1088 = vpop.f32.mrf.mxu0
      %v1089 = vadd.f32 %v891, %v1088
      %1090 = vmatmul.bf16.gmra.mxu0 %v955
      %v1091 = vpop.f32.mrf.mxu0
      %v1092 = vadd.f32 %v891, %v1091
      %v1093 = vpop.f32.mrf.mxu0
      %v1094 = vadd.f32 %v891, %v1093
      %1095 = vmatmul.bf16.gmra.mxu0 %v958
      %v1096 = vpop.f32.mrf.mxu0
      %v1097 = vadd.f32 %v891, %v1096
      %v1098 = vpop.f32.mrf.mxu0
      %v1099 = vadd.f32 %v891, %v1098
      %1100 = vmatmul.bf16.gmra.mxu0 %v961
      %v1101 = vpop.f32.mrf.mxu0
      %v1102 = vadd.f32 %v891, %v1101
      %v1103 = vpop.f32.mrf.mxu0
      %v1104 = vadd.f32 %v891, %v1103
      %1105 = vmatmul.bf16.gmra.mxu0 %v964
      %v1106 = vpop.f32.mrf.mxu0
      %v1107 = vadd.f32 %v891, %v1106
      %v1108 = vpop.f32.mrf.mxu0
      %v1109 = vadd.f32 %v891, %v1108
      %1110 = vmatmul.bf16.gmra.mxu0 %v967
      %v1111 = vpop.f32.mrf.mxu0
      %v1112 = vadd.f32 %v891, %v1111
      %v1113 = vpop.f32.mrf.mxu0
      %v1114 = vadd.f32 %v891, %v1113
      %1115 = vmatmul.bf16.gmra.mxu0 %v970
      %v1116 = vpop.f32.mrf.mxu0
      %v1117 = vadd.f32 %v891, %v1116
      %v1118 = vpop.f32.mrf.mxu0
      %v1119 = vadd.f32 %v891, %v1118
      %1120 = vmatmul.bf16.gmra.mxu0 %v973
      %v1121 = vpop.f32.mrf.mxu0
      %v1122 = vadd.f32 %v891, %v1121
      %v1123 = vpop.f32.mrf.mxu0
      %v1124 = vadd.f32 %v891, %v1123
      %1125 = vmatmul.bf16.gmra.mxu0 %v976
      %v1126 = vpop.f32.mrf.mxu0
      %v1127 = vadd.f32 %v891, %v1126
      %v1128 = vpop.f32.mrf.mxu0
      %v1129 = vadd.f32 %v891, %v1128
      %1130 = vmatmul.bf16.gmra.mxu0 %v979
      %v1131 = vpop.f32.mrf.mxu0
      %v1132 = vadd.f32 %v891, %v1131
      %v1133 = vpop.f32.mrf.mxu0
      %v1134 = vadd.f32 %v891, %v1133
      %1135 = vmatmul.bf16.gmra.mxu0 %v982
      %v1136 = vpop.f32.mrf.mxu0
      %v1137 = vadd.f32 %v891, %v1136
      %v1138 = vpop.f32.mrf.mxu0
      %v1139 = vadd.f32 %v891, %v1138
      %1140 = vmatmul.bf16.gmra.mxu0 %v985
      %v1141 = vpop.f32.mrf.mxu0
      %v1142 = vadd.f32 %v891, %v1141
      %v1143 = vpop.f32.mrf.mxu0
      %v1144 = vadd.f32 %v891, %v1143
      %1145 = vmatmul.bf16.gmra.mxu0 %v988
      %v1146 = vpop.f32.mrf.mxu0
      %v1147 = vadd.f32 %v891, %v1146
      %v1148 = vpop.f32.mrf.mxu0
      %v1149 = vadd.f32 %v891, %v1148
      %1150 = vmatmul.bf16.gmra.mxu0 %v991
      %v1151 = vpop.f32.mrf.mxu0
      %v1152 = vadd.f32 %v891, %v1151
      %v1153 = vpop.f32.mrf.mxu0
      %v1154 = vadd.f32 %v891, %v1153
      %1155 = vmatmul.bf16.gmra.mxu0 %v994
      %v1156 = vpop.f32.mrf.mxu0
      %v1157 = vadd.f32 %v891, %v1156
      %v1158 = vpop.f32.mrf.mxu0
      %v1159 = vadd.f32 %v891, %v1158
      %1160 = vmatmul.bf16.gmra.mxu0 %v997
      %v1161 = vpop.f32.mrf.mxu0
      %v1162 = vadd.f32 %v891, %v1161
      %v1163 = vpop.f32.mrf.mxu0
      %v1164 = vadd.f32 %v891, %v1163
      %1165 = vmatmul.bf16.gmra.mxu0 %v1000
      %v1166 = vpop.f32.mrf.mxu0
      %v1167 = vadd.f32 %v891, %v1166
      %v1168 = vpop.f32.mrf.mxu0
      %v1169 = vadd.f32 %v891, %v1168
      %1170 = vdwg.mxu0
      %vm1171 = vcmp.ge.f32.partialorder %v1012, 0.0
      %vm1172 = vcmp.ge.f32.partialorder %v1014, 0.0
      %vm1173 = vcmp.ge.f32.partialorder %v1017, 0.0
      %vm1174 = vcmp.ge.f32.partialorder %v1019, 0.0
      %vm1175 = vcmp.ge.f32.partialorder %v1022, 0.0
      %vm1176 = vcmp.ge.f32.partialorder %v1024, 0.0
      %vm1177 = vcmp.ge.f32.partialorder %v1027, 0.0
      %vm1178 = vcmp.ge.f32.partialorder %v1029, 0.0
      %vm1179 = vcmp.ge.f32.partialorder %v1032, 0.0
      %vm1180 = vcmp.ge.f32.partialorder %v1034, 0.0
      %vm1181 = vcmp.ge.f32.partialorder %v1037, 0.0
      %vm1182 = vcmp.ge.f32.partialorder %v1039, 0.0
      %vm1183 = vcmp.ge.f32.partialorder %v1042, 0.0
      %vm1184 = vcmp.ge.f32.partialorder %v1044, 0.0
      %vm1185 = vcmp.ge.f32.partialorder %v1047, 0.0
      %vm1186 = vcmp.ge.f32.partialorder %v1049, 0.0
      %vm1187 = vcmp.ge.f32.partialorder %v1052, 0.0
      %vm1188 = vcmp.ge.f32.partialorder %v1054, 0.0
      %vm1189 = vcmp.ge.f32.partialorder %v1057, 0.0
      %vm1190 = vcmp.ge.f32.partialorder %v1059, 0.0
      %vm1191 = vcmp.ge.f32.partialorder %v1062, 0.0
      %vm1192 = vcmp.ge.f32.partialorder %v1064, 0.0
      %vm1193 = vcmp.ge.f32.partialorder %v1067, 0.0
      %vm1194 = vcmp.ge.f32.partialorder %v1069, 0.0
      %vm1195 = vcmp.ge.f32.partialorder %v1072, 0.0
      %vm1196 = vcmp.ge.f32.partialorder %v1074, 0.0
      %vm1197 = vcmp.ge.f32.partialorder %v1077, 0.0
      %vm1198 = vcmp.ge.f32.partialorder %v1079, 0.0
      %vm1199 = vcmp.ge.f32.partialorder %v1082, 0.0
      %vm1200 = vcmp.ge.f32.partialorder %v1084, 0.0
      %vm1201 = vcmp.ge.f32.partialorder %v1087, 0.0
      %vm1202 = vcmp.ge.f32.partialorder %v1089, 0.0
      %vm1203 = vcmp.ge.f32.partialorder %v1092, 0.0
      %vm1204 = vcmp.ge.f32.partialorder %v1094, 0.0
      %vm1205 = vcmp.ge.f32.partialorder %v1097, 0.0
      %vm1206 = vcmp.ge.f32.partialorder %v1099, 0.0
      %vm1207 = vcmp.ge.f32.partialorder %v1102, 0.0
      %vm1208 = vcmp.ge.f32.partialorder %v1104, 0.0
      %vm1209 = vcmp.ge.f32.partialorder %v1107, 0.0
      %vm1210 = vcmp.ge.f32.partialorder %v1109, 0.0
      %vm1211 = vcmp.ge.f32.partialorder %v1112, 0.0
      %vm1212 = vcmp.ge.f32.partialorder %v1114, 0.0
      %vm1213 = vcmp.ge.f32.partialorder %v1117, 0.0
      %vm1214 = vcmp.ge.f32.partialorder %v1119, 0.0
      %vm1215 = vcmp.ge.f32.partialorder %v1122, 0.0
      %vm1216 = vcmp.ge.f32.partialorder %v1124, 0.0
      %vm1217 = vcmp.ge.f32.partialorder %v1127, 0.0
      %vm1218 = vcmp.ge.f32.partialorder %v1129, 0.0
      %vm1219 = vcmp.ge.f32.partialorder %v1132, 0.0
      %vm1220 = vcmp.ge.f32.partialorder %v1134, 0.0
      %vm1221 = vcmp.ge.f32.partialorder %v1137, 0.0
      %vm1222 = vcmp.ge.f32.partialorder %v1139, 0.0
      %vm1223 = vcmp.ge.f32.partialorder %v1142, 0.0
      %vm1224 = vcmp.ge.f32.partialorder %v1144, 0.0
      %vm1225 = vcmp.ge.f32.partialorder %v1147, 0.0
      %vm1226 = vcmp.ge.f32.partialorder %v1149, 0.0
      %vm1227 = vcmp.ge.f32.partialorder %v1152, 0.0
      %vm1228 = vcmp.ge.f32.partialorder %v1154, 0.0
      %vm1229 = vcmp.ge.f32.partialorder %v1157, 0.0
      %vm1230 = vcmp.ge.f32.partialorder %v1159, 0.0
      %vm1231 = vcmp.ge.f32.partialorder %v1162, 0.0
      %vm1232 = vcmp.ge.f32.partialorder %v1164, 0.0
      %vm1233 = vcmp.ge.f32.partialorder %v1167, 0.0
      %vm1234 = vcmp.ge.f32.partialorder %v1169, 0.0
      %v1235 = vld [vmem:[%s6] sm:$0x1]
      %v1237 = vperm.slane %v1235, 0
      %v1239 = vmul.f32 %v1237, %v1012
      %v1240 = vmul.f32 %v1237, %v1014
      %v1241 = vmul.f32 %v1237, %v1017
      %v1242 = vmul.f32 %v1237, %v1019
      %v1243 = vmul.f32 %v1237, %v1022
      %v1244 = vmul.f32 %v1237, %v1024
      %v1245 = vmul.f32 %v1237, %v1027
      %v1246 = vmul.f32 %v1237, %v1029
      %v1247 = vmul.f32 %v1237, %v1032
      %v1248 = vmul.f32 %v1237, %v1034
      %v1249 = vmul.f32 %v1237, %v1037
      %v1250 = vmul.f32 %v1237, %v1039
      %v1251 = vmul.f32 %v1237, %v1042
      %v1252 = vmul.f32 %v1237, %v1044
      %v1253 = vmul.f32 %v1237, %v1047
      %v1254 = vmul.f32 %v1237, %v1049
      %v1255 = vmul.f32 %v1237, %v1052
      %v1256 = vmul.f32 %v1237, %v1054
      %v1257 = vmul.f32 %v1237, %v1057
      %v1258 = vmul.f32 %v1237, %v1059
      %v1259 = vmul.f32 %v1237, %v1062
      %v1260 = vmul.f32 %v1237, %v1064
      %v1261 = vmul.f32 %v1237, %v1067
      %v1262 = vmul.f32 %v1237, %v1069
      %v1263 = vmul.f32 %v1237, %v1072
      %v1264 = vmul.f32 %v1237, %v1074
      %v1265 = vmul.f32 %v1237, %v1077
      %v1266 = vmul.f32 %v1237, %v1079
      %v1267 = vmul.f32 %v1237, %v1082
      %v1268 = vmul.f32 %v1237, %v1084
      %v1269 = vmul.f32 %v1237, %v1087
      %v1270 = vmul.f32 %v1237, %v1089
      %v1271 = vmul.f32 %v1237, %v1092
      %v1272 = vmul.f32 %v1237, %v1094
      %v1273 = vmul.f32 %v1237, %v1097
      %v1274 = vmul.f32 %v1237, %v1099
      %v1275 = vmul.f32 %v1237, %v1102
      %v1276 = vmul.f32 %v1237, %v1104
      %v1277 = vmul.f32 %v1237, %v1107
      %v1278 = vmul.f32 %v1237, %v1109
      %v1279 = vmul.f32 %v1237, %v1112
      %v1280 = vmul.f32 %v1237, %v1114
      %v1281 = vmul.f32 %v1237, %v1117
      %v1282 = vmul.f32 %v1237, %v1119
      %v1283 = vmul.f32 %v1237, %v1122
      %v1284 = vmul.f32 %v1237, %v1124
      %v1285 = vmul.f32 %v1237, %v1127
      %v1286 = vmul.f32 %v1237, %v1129
      %v1287 = vmul.f32 %v1237, %v1132
      %v1288 = vmul.f32 %v1237, %v1134
      %v1289 = vmul.f32 %v1237, %v1137
      %v1290 = vmul.f32 %v1237, %v1139
      %v1291 = vmul.f32 %v1237, %v1142
      %v1292 = vmul.f32 %v1237, %v1144
      %v1293 = vmul.f32 %v1237, %v1147
      %v1294 = vmul.f32 %v1237, %v1149
      %v1295 = vmul.f32 %v1237, %v1152
      %v1296 = vmul.f32 %v1237, %v1154
      %v1297 = vmul.f32 %v1237, %v1157
      %v1298 = vmul.f32 %v1237, %v1159
      %v1299 = vmul.f32 %v1237, %v1162
      %v1300 = vmul.f32 %v1237, %v1164
      %v1301 = vmul.f32 %v1237, %v1167
      %v1302 = vmul.f32 %v1237, %v1169
      %v1303 = vsel %vm1171, %v1012, %v1239
      %v1304 = vsel %vm1172, %v1014, %v1240
      %v1305 = vsel %vm1173, %v1017, %v1241
      %v1306 = vsel %vm1174, %v1019, %v1242
      %v1307 = vsel %vm1175, %v1022, %v1243
      %v1308 = vsel %vm1176, %v1024, %v1244
      %v1309 = vsel %vm1177, %v1027, %v1245
      %v1310 = vsel %vm1178, %v1029, %v1246
      %v1311 = vsel %vm1179, %v1032, %v1247
      %v1312 = vsel %vm1180, %v1034, %v1248
      %v1313 = vsel %vm1181, %v1037, %v1249
      %v1314 = vsel %vm1182, %v1039, %v1250
      %v1315 = vsel %vm1183, %v1042, %v1251
      %v1316 = vsel %vm1184, %v1044, %v1252
      %v1317 = vsel %vm1185, %v1047, %v1253
      %v1318 = vsel %vm1186, %v1049, %v1254
      %v1319 = vsel %vm1187, %v1052, %v1255
      %v1320 = vsel %vm1188, %v1054, %v1256
      %v1321 = vsel %vm1189, %v1057, %v1257
      %v1322 = vsel %vm1190, %v1059, %v1258
      %v1323 = vsel %vm1191, %v1062, %v1259
      %v1324 = vsel %vm1192, %v1064, %v1260
      %v1325 = vsel %vm1193, %v1067, %v1261
      %v1326 = vsel %vm1194, %v1069, %v1262
      %v1327 = vsel %vm1195, %v1072, %v1263
      %v1328 = vsel %vm1196, %v1074, %v1264
      %v1329 = vsel %vm1197, %v1077, %v1265
      %v1330 = vsel %vm1198, %v1079, %v1266
      %v1331 = vsel %vm1199, %v1082, %v1267
      %v1332 = vsel %vm1200, %v1084, %v1268
      %v1333 = vsel %vm1201, %v1087, %v1269
      %v1334 = vsel %vm1202, %v1089, %v1270
      %v1335 = vsel %vm1203, %v1092, %v1271
      %v1336 = vsel %vm1204, %v1094, %v1272
      %v1337 = vsel %vm1205, %v1097, %v1273
      %v1338 = vsel %vm1206, %v1099, %v1274
      %v1339 = vsel %vm1207, %v1102, %v1275
      %v1340 = vsel %vm1208, %v1104, %v1276
      %v1341 = vsel %vm1209, %v1107, %v1277
      %v1342 = vsel %vm1210, %v1109, %v1278
      %v1343 = vsel %vm1211, %v1112, %v1279
      %v1344 = vsel %vm1212, %v1114, %v1280
      %v1345 = vsel %vm1213, %v1117, %v1281
      %v1346 = vsel %vm1214, %v1119, %v1282
      %v1347 = vsel %vm1215, %v1122, %v1283
      %v1348 = vsel %vm1216, %v1124, %v1284
      %v1349 = vsel %vm1217, %v1127, %v1285
      %v1350 = vsel %vm1218, %v1129, %v1286
      %v1351 = vsel %vm1219, %v1132, %v1287
      %v1352 = vsel %vm1220, %v1134, %v1288
      %v1353 = vsel %vm1221, %v1137, %v1289
      %v1354 = vsel %vm1222, %v1139, %v1290
      %v1355 = vsel %vm1223, %v1142, %v1291
      %v1356 = vsel %vm1224, %v1144, %v1292
      %v1357 = vsel %vm1225, %v1147, %v1293
      %v1358 = vsel %vm1226, %v1149, %v1294
      %v1359 = vsel %vm1227, %v1152, %v1295
      %v1360 = vsel %vm1228, %v1154, %v1296
      %v1361 = vsel %vm1229, %v1157, %v1297
      %v1362 = vsel %vm1230, %v1159, %v1298
      %v1363 = vsel %vm1231, %v1162, %v1299
      %v1364 = vsel %vm1232, %v1164, %v1300
      %v1365 = vsel %vm1233, %v1167, %v1301
      %v1366 = vsel %vm1234, %v1169, %v1302
      %1367 = vst.msk [vmem:[%s280] sm:$0xff] %vm391, %v1303
      %1368 = vst.msk [vmem:[%s280 + $0x8] sm:$0xff] %vm391, %v1304
      %1369 = vst.msk [vmem:[%s280 + $0x10] sm:$0xff] %vm391, %v1305
      %1370 = vst.msk [vmem:[%s280 + $0x18] sm:$0xff] %vm391, %v1306
      %1371 = vst.msk [vmem:[%s280 + $0x20] sm:$0xff] %vm391, %v1307
      %1372 = vst.msk [vmem:[%s280 + $0x28] sm:$0xff] %vm391, %v1308
      %1373 = vst.msk [vmem:[%s280 + $0x30] sm:$0xff] %vm391, %v1309
      %1374 = vst.msk [vmem:[%s280 + $0x38] sm:$0xff] %vm391, %v1310
      %1375 = vst.msk [vmem:[%s280 + $0x40] sm:$0xff] %vm391, %v1311
      %1376 = vst.msk [vmem:[%s280 + $0x48] sm:$0xff] %vm391, %v1312
      %1377 = vst.msk [vmem:[%s280 + $0x50] sm:$0xff] %vm391, %v1313
      %1378 = vst.msk [vmem:[%s280 + $0x58] sm:$0xff] %vm391, %v1314
      %1379 = vst.msk [vmem:[%s280 + $0x60] sm:$0xff] %vm391, %v1315
      %1380 = vst.msk [vmem:[%s280 + $0x68] sm:$0xff] %vm391, %v1316
      %1381 = vst.msk [vmem:[%s280 + $0x70] sm:$0xff] %vm391, %v1317
      %1382 = vst.msk [vmem:[%s280 + $0x78] sm:$0xff] %vm391, %v1318
      %1383 = vst.msk [vmem:[%s280 + $0x80] sm:$0xff] %vm391, %v1319
      %1384 = vst.msk [vmem:[%s280 + $0x88] sm:$0xff] %vm391, %v1320
      %1385 = vst.msk [vmem:[%s280 + $0x90] sm:$0xff] %vm391, %v1321
      %1386 = vst.msk [vmem:[%s280 + $0x98] sm:$0xff] %vm391, %v1322
      %1387 = vst.msk [vmem:[%s280 + $0xa0] sm:$0xff] %vm391, %v1323
      %1388 = vst.msk [vmem:[%s280 + $0xa8] sm:$0xff] %vm391, %v1324
      %1389 = vst.msk [vmem:[%s280 + $0xb0] sm:$0xff] %vm391, %v1325
      %1390 = vst.msk [vmem:[%s280 + $0xb8] sm:$0xff] %vm391, %v1326
      %1391 = vst.msk [vmem:[%s280 + $0xc0] sm:$0xff] %vm391, %v1327
      %1392 = vst.msk [vmem:[%s280 + $0xc8] sm:$0xff] %vm391, %v1328
      %1393 = vst.msk [vmem:[%s280 + $0xd0] sm:$0xff] %vm391, %v1329
      %1394 = vst.msk [vmem:[%s280 + $0xd8] sm:$0xff] %vm391, %v1330
      %1395 = vst.msk [vmem:[%s280 + $0xe0] sm:$0xff] %vm391, %v1331
      %1396 = vst.msk [vmem:[%s280 + $0xe8] sm:$0xff] %vm391, %v1332
      %1397 = vst.msk [vmem:[%s280 + $0xf0] sm:$0xff] %vm391, %v1333
      %1398 = vst.msk [vmem:[%s280 + $0xf8] sm:$0xff] %vm391, %v1334
      %1399 = vst.msk [vmem:[%s280 + $0x100] sm:$0xff] %vm391, %v1335
      %1400 = vst.msk [vmem:[%s280 + $0x108] sm:$0xff] %vm391, %v1336
      %1401 = vst.msk [vmem:[%s280 + $0x110] sm:$0xff] %vm391, %v1337
      %1402 = vst.msk [vmem:[%s280 + $0x118] sm:$0xff] %vm391, %v1338
      %1403 = vst.msk [vmem:[%s280 + $0x120] sm:$0xff] %vm391, %v1339
      %1404 = vst.msk [vmem:[%s280 + $0x128] sm:$0xff] %vm391, %v1340
      %1405 = vst.msk [vmem:[%s280 + $0x130] sm:$0xff] %vm391, %v1341
      %1406 = vst.msk [vmem:[%s280 + $0x138] sm:$0xff] %vm391, %v1342
      %1407 = vst.msk [vmem:[%s280 + $0x140] sm:$0xff] %vm391, %v1343
      %1408 = vst.msk [vmem:[%s280 + $0x148] sm:$0xff] %vm391, %v1344
      %1409 = vst.msk [vmem:[%s280 + $0x150] sm:$0xff] %vm391, %v1345
      %1410 = vst.msk [vmem:[%s280 + $0x158] sm:$0xff] %vm391, %v1346
      %1411 = vst.msk [vmem:[%s280 + $0x160] sm:$0xff] %vm391, %v1347
      %1412 = vst.msk [vmem:[%s280 + $0x168] sm:$0xff] %vm391, %v1348
      %1413 = vst.msk [vmem:[%s280 + $0x170] sm:$0xff] %vm391, %v1349
      %1414 = vst.msk [vmem:[%s280 + $0x178] sm:$0xff] %vm391, %v1350
      %1415 = vst.msk [vmem:[%s280 + $0x180] sm:$0xff] %vm391, %v1351
      %1416 = vst.msk [vmem:[%s280 + $0x188] sm:$0xff] %vm391, %v1352
      %1417 = vst.msk [vmem:[%s280 + $0x190] sm:$0xff] %vm391, %v1353
      %1418 = vst.msk [vmem:[%s280 + $0x198] sm:$0xff] %vm391, %v1354
      %1419 = vst.msk [vmem:[%s280 + $0x1a0] sm:$0xff] %vm391, %v1355
      %1420 = vst.msk [vmem:[%s280 + $0x1a8] sm:$0xff] %vm391, %v1356
      %1421 = vst.msk [vmem:[%s280 + $0x1b0] sm:$0xff] %vm391, %v1357
      %1422 = vst.msk [vmem:[%s280 + $0x1b8] sm:$0xff] %vm391, %v1358
      %1423 = vst.msk [vmem:[%s280 + $0x1c0] sm:$0xff] %vm391, %v1359
      %1424 = vst.msk [vmem:[%s280 + $0x1c8] sm:$0xff] %vm391, %v1360
      %1425 = vst.msk [vmem:[%s280 + $0x1d0] sm:$0xff] %vm391, %v1361
      %1426 = vst.msk [vmem:[%s280 + $0x1d8] sm:$0xff] %vm391, %v1362
      %1427 = vst.msk [vmem:[%s280 + $0x1e0] sm:$0xff] %vm391, %v1363
      %1428 = vst.msk [vmem:[%s280 + $0x1e8] sm:$0xff] %vm391, %v1364
      %1429 = vst.msk [vmem:[%s280 + $0x1f0] sm:$0xff] %vm391, %v1365
      %1430 = vst.msk [vmem:[%s280 + $0x1f8] sm:$0xff] %vm391, %v1366
      %s1431 = smul.u32 64, %s18
      %p1432 = scmp.lt.s32.totalorder %s1431, 127
      %s1433 = scalar_select %p1432, %s1431, 127
      %s1434 = smul.addr %s1433, 8
      %s1435 = scalar_lea.vmem %s7, %s1434
      // Predicated region
      $region49: #{fused_mlp_chain.1} parent=47 // pred_check
        %p1436 = pneg %p188
      $region50: #{fused_mlp_chain.1} parent=47 // pred_check_branch
        %1438 = sbr.rel (%p1436) target = $region52
      $region51: #{fused_mlp_chain.1} parent=47 // pred_region
        %s1439 = smul.u32 64, %s18
      $region52: #{fused_mlp_chain.1} parent=47 // pred_fallthru
        _
    $region48: #{fused_mlp_chain.1} parent=5 // pred_fallthru
      _
    %p1440 = scmp.le.s32.totalorder 2, %s13
    // Predicated region
    $region53: #{fused_mlp_chain.1} parent=5 // pred_check
      %p1441 = pneg %p1440
    $region54: #{fused_mlp_chain.1} parent=5 // pred_check_branch
      %1443 = sbr.rel (%p1441) target = $region56
    $region55: #{fused_mlp_chain.1} parent=5 // pred_region
      %s1444 = ssub.s32 %s13, 2
      // Predicated region
      $region57: #{fused_mlp_chain.1} parent=55 // pred_check
        %p1445 = pneg %p194
      $region58: #{fused_mlp_chain.1} parent=55 // pred_check_branch
        %1447 = sbr.rel (%p1445) target = $region60
      $region59: #{fused_mlp_chain.1} parent=55 // pred_region
        %s1448 = smul.u32 64, %s19
        %p1449 = scmp.lt.s32.totalorder %s1448, 127
        %s1450 = scalar_select %p1449, %s1448, 127
        %s1451 = smul.addr %s1450, 8
        %s1452 = scalar_lea.vmem %s7, %s1451
      $region60: #{fused_mlp_chain.1} parent=55 // pred_fallthru
        _
    $region56: #{fused_mlp_chain.1} parent=5 // pred_fallthru
      _
  $region6: #{fused_mlp_chain.1} parent=0 // loop_footer
    %s17 = sadd.s32 1, %s13
  $region7: #{fused_mlp_chain.1} parent=0 // loop_footer_branch
    %12 = sbr.rel target = $region3
  $region8: #{fused_mlp_chain.1} parent=0 // loop_exit
    _

</llo_original>
